<compile_context>
chip_gen: v6e
topology: v6e:2x2x1
jax: 0.10.0
libtpu: 0.0.40
codegen_flags: <defaults>
</compile_context>

<pallas_src>
import numpy as np
import jax
import jax.numpy as jnp
from jax.experimental import pallas as pl
from jax.experimental.pallas import tpu as pltpu

# --- hyper-parameters from the PyTorch script --------------------------------
SIGMA = 0.001
STEP_SIZE = 0.5 * SIGMA ** 2               # step_size
ALPHA = 1.0
EPSILON = 0.01
INV_SIGMA2_NOISE = 1.0 / (SIGMA * SIGMA)   # likelihood.norm (sigma2_noise = 1/norm)
INV_SIGMA2_PRIOR = 1.0 / (SIGMA * SIGMA)   # ScorePrior: grad = (x - denoiser(x)) / sigma^2


# ----------------------- complex <-> real-view helpers -----------------------
def view_as_real(z):
    return jnp.stack([z.real, z.imag], axis=-1)


def view_as_complex(r):
    return r[..., 0] + 1j * r[..., 1]


def real_view_rows(z):
    """complex (N, C, H, Wf) -> real (N*C*H, 2*Wf); (re, im) interleaved along lanes.

    This is the natural row-major flattening of view_as_real, so no extra
    frequency-domain repack/relayout step is introduced (per the perf review).
    """
    n, c, h, wf = z.shape
    return jnp.stack([z.real, z.imag], axis=-1).reshape(n * c * h, 2 * wf)


# ------------- Pallas kernel 1: 3x3-median residual (x - median3x3(x)) --------
def _sort3(a, b, c):
    lo, hi = jnp.minimum(a, b), jnp.maximum(a, b)
    lo2, hi = jnp.minimum(hi, c), jnp.maximum(hi, c)
    lo, mid = jnp.minimum(lo, lo2), jnp.maximum(lo, lo2)
    return lo, mid, hi


def _med3(a, b, c):
    return jnp.maximum(jnp.minimum(a, b), jnp.minimum(jnp.maximum(a, b), c))


def _median_residual_kernel(xp_ref, o_ref):
    # xp_ref: (B, H+2, W+2) zero-padded batch; o_ref: (B, H, W). Single program.
    B, H, W = o_ref.shape
    # Separable 3x3 median: per-column sort of the 3 vertical neighbours, then
    # med3(max3(lo), med3(mid), min3(hi)) over 3 horizontal shifts (exact median of 9).
    v_up = xp_ref[:, pl.ds(0, H), :]      # three row-shifted ref loads (static offsets)
    v_md = xp_ref[:, pl.ds(1, H), :]
    v_dn = xp_ref[:, pl.ds(2, H), :]
    lo, mid, hi = _sort3(v_up, v_md, v_dn)          # each (B, H, W+2)

    sl = lambda a, j: a[:, :, j:j + W]              # lane-offset slices (static)
    mx = jnp.maximum(jnp.maximum(sl(lo, 0), sl(lo, 1)), sl(lo, 2))
    md = _med3(sl(mid, 0), sl(mid, 1), sl(mid, 2))
    mn = jnp.minimum(jnp.minimum(sl(hi, 0), sl(hi, 1)), sl(hi, 2))
    med = _med3(mx, md, mn)                         # exact 3x3 median (zero-padded border,
                                                    # same convention as the reference)
    # 1/sigma^2 of the ScorePrior is folded into the frequency-domain coefficient.
    o_ref[...] = sl(v_md, 1) - med


def median_residual(x):
    N, C, H, W = x.shape
    # TODO(synk): the 1-pixel zero halo is still built by XLA (~28 KiB, ~1us); an
    # in-kernel halo via pltpu.roll + iota masks would remove it, but sub-128-lane
    # rotates at this tiny width are the least robust lowering path, so the pad is
    # kept as the safe path while the grid itself is collapsed to a single program.
    xp = jnp.pad(x, ((0, 0), (0, 0), (1, 1), (1, 1))).reshape(N * C, H + 2, W + 2)
    # Single program over the whole batch (grid-step fixed cost dominated the old
    # (N*C,) grid). On v7x one could use grid=(2,) with N*C//2 images per block and
    # dimension_semantics=("parallel",) to feed both TensorCores.
    out = pl.pallas_call(
        _median_residual_kernel,
        out_shape=jax.ShapeDtypeStruct((N * C, H, W), x.dtype),
        grid=(1,),
        in_specs=[pl.BlockSpec((N * C, H + 2, W + 2), lambda i: (0, 0, 0))],
        out_specs=pl.BlockSpec((N * C, H, W), lambda i: (0, 0, 0)),
        compiler_params=pltpu.CompilerParams(dimension_semantics=("arbitrary",)),
    )(xp)
    return out.reshape(N, C, H, W)


# ------------- Pallas kernel 2: per-frequency Langevin update (1 program) ------
def _freq_update_kernel(d_ref, c_ref, o_ref):
    # d_ref / c_ref: (4, R, L); o_ref: (R, L)
    # z = -cx*x_bar + cy*y_bar - cg*fft(x - med) + cn*noise   (pure VPU FMAs; all
    # mask-derived factors, incl. 1/sigma^2 and sqrt(2*step), baked at setup).
    o_ref[...] = (c_ref[1] * d_ref[1]
                  - c_ref[0] * d_ref[0]
                  - c_ref[2] * d_ref[2]
                  + c_ref[3] * d_ref[3])


def freq_update(data, coeffs):
    # data:   (4, R, L) = stacked [x_bar, y_bar, r_bar, noise] in natural layout
    # coeffs: (4, R, L) = stacked [cx, cy, cg, cn], built once at setup
    K, R, L = data.shape
    spec_in = pl.BlockSpec((K, R, L), lambda i: (0, 0, 0))
    return pl.pallas_call(
        _freq_update_kernel,
        out_shape=jax.ShapeDtypeStruct((R, L), data.dtype),
        grid=(1,),
        in_specs=[spec_in, spec_in],
        out_specs=pl.BlockSpec((R, L), lambda i: (0, 0)),
        compiler_params=pltpu.CompilerParams(dimension_semantics=("arbitrary",)),
    )(data, coeffs)


# --------------------------- BlurFFT physics (setup) ---------------------------
def make_blur_fft_physics(img_size):
    C, H, W = img_size
    kh, kw = 5, 5
    filt = jnp.ones((1, 1, kh, kw), jnp.float32) / 25.0
    filt = jnp.tile(filt, (1, C, 1, 1))
    f_pad = jnp.zeros((1, C, H, W), jnp.float32).at[:, :, :kh, :kw].set(filt)
    f_pad = jnp.roll(f_pad, shift=(-(kh // 2), -(kw // 2)), axis=(2, 3))
    filter_fft = jnp.fft.rfft2(f_pad)                                   # (1, C, H, Wf)
    mask = jnp.abs(filter_fft).astype(jnp.float32)                      # BlurFFT.mask
    angle = jnp.exp(-1j * jnp.angle(filter_fft)).astype(jnp.complex64)  # BlurFFT.angle
    return mask, angle


def make_pula_coeffs(mask, batch):
    """Per-frequency constants of the PULA update, baked once at setup time.

    cx = step/(eps+m^2) * m^2 / sigma^2 = 0.5*m^2/(eps+m^2)   (multiplies x_bar, negated)
    cy = 0.5*m/(eps+m^2)                                       (multiplies y_bar)
    cg = step/(eps+m^2) * alpha / sigma^2 = 0.5*alpha/(eps+m^2)(multiplies fft(x-med), neg.)
    cn = sqrt(2*step/(eps+m^2))                                (multiplies noise)
    Broadcast over batch + re/im, flattened to the natural (N*C*H, 2*Wf) layout and
    stacked into a single (4, R, L) operand so the kernel DMAs one array, not eight.
    """
    _, C, H, Wf = mask.shape
    m = mask.astype(jnp.float32)
    inv = 1.0 / (EPSILON + m * m)
    coefs = (0.5 * m * m * inv,
             0.5 * m * inv,
             0.5 * ALPHA * inv,
             jnp.sqrt(2.0 * STEP_SIZE * inv))

    def expand(c):  # (1, C, H, Wf) -> (N*C*H, 2*Wf)
        c = jnp.broadcast_to(c[..., None], (batch, C, H, Wf, 2))
        return c.reshape(batch * C * H, 2 * Wf)

    return jnp.stack([expand(c) for c in coefs], axis=0)               # (4, R, L)


# ------------------------------ PULA forward ----------------------------------
def pula_iterator_forward(x, y, noise, angle, coeffs):
    N, C, H, W = x.shape
    Wf = W // 2 + 1
    R, L = N * C * H, 2 * Wf
    x_bar = jnp.fft.rfft2(x, norm="ortho")                      # physics.V_adjoint(x)
    y_bar = jnp.fft.rfft2(y, norm="ortho") * jnp.conj(angle)    # physics.U_adjoint(y)
    r = median_residual(x)                                      # Pallas kernel 1
    r_bar = jnp.fft.rfft2(r, norm="ortho")
    data = jnp.stack([real_view_rows(x_bar), real_view_rows(y_bar),
                      real_view_rows(r_bar), noise.reshape(R, L)], axis=0)
    z = freq_update(data, coeffs)                               # Pallas kernel 2
    z = view_as_complex(z.reshape(N, C, H, Wf, 2))
    return x + jnp.fft.irfft2(z, s=(H, W), norm="ortho")        # physics.V(z)


# ----------------------------- pure-JAX reference ------------------------------
def pula_iterator_ref(x, y, noise, mask, angle):
    N, C, H, W = x.shape
    x_bar = view_as_real(jnp.fft.rfft2(x, norm="ortho"))
    y_bar = view_as_real(jnp.fft.rfft2(y, norm="ortho") * jnp.conj(angle))
    mask_rv = jnp.stack([mask, mask], axis=-1)
    ss = STEP_SIZE / (EPSILON + mask_rv ** 2)
    lhood = -(mask_rv ** 2 * x_bar - mask_rv * y_bar) * INV_SIGMA2_NOISE
    xp = jnp.pad(x, ((0, 0), (0, 0), (1, 1), (1, 1)))
    patches = jnp.stack(
        [xp[:, :, di:di + H, dj:dj + W] for di in range(3) for dj in range(3)], axis=0)
    med = jnp.median(patches, axis=0)
    g = (x - med) * INV_SIGMA2_PRIOR
    lprior = -view_as_real(jnp.fft.rfft2(g, norm="ortho")) * ALPHA
    z = ss * (lhood + lprior) + jnp.sqrt(2.0 * ss) * noise
    return x + jnp.fft.irfft2(view_as_complex(z), s=(H, W), norm="ortho")


if __name__ == "__main__":
    N, C, H, W = 2, 3, 32, 32
    Wf = W // 2 + 1
    key = jax.random.PRNGKey(0)
    kx, kmeas, klangevin = jax.random.split(key, 3)

    mask, angle = make_blur_fft_physics((C, H, W))
    coeffs = make_pula_coeffs(mask, N)          # static, built once outside the hot path

    # x ~ image-like input; y = physics(x) = blur(x) + Gaussian noise
    x = jax.random.uniform(kx, (N, C, H, W), jnp.float32)
    y = jnp.fft.irfft2(jnp.fft.rfft2(x, norm="ortho") * mask * angle,
                       s=(H, W), norm="ortho")
    y = y + SIGMA * jax.random.normal(kmeas, y.shape, jnp.float32)
    # noise = torch.randn_like(x_bar) -> frequency-domain real-view shape (passed in)
    noise = jax.random.normal(klangevin, (N, C, H, Wf, 2), jnp.float32)

    out = jax.jit(pula_iterator_forward)(x, y, noise, angle, coeffs)
    out = jax.block_until_ready(out)

    ref = pula_iterator_ref(x, y, noise, mask, angle)
    assert out.shape == (N, C, H, W) and out.dtype == jnp.float32
    np.testing.assert_allclose(np.asarray(out), np.asarray(ref), rtol=1e-4, atol=1e-4)
    print("KERNEL_OK")
</pallas_src>

<mosaic_0001>
module attributes {stable_mosaic.version = 11 : i64} {
  func.func @_median_residual_kernel(%arg0: i32, %arg1: memref<6x34x34xf32, #tpu.memory_space<vmem>>, %arg2: memref<6x32x32xf32, #tpu.memory_space<vmem>>) attributes {dimension_semantics = [#tpu.dimension_semantics<arbitrary>], iteration_bounds = array<i64: 1>, scalar_prefetch = 0 : i64, scratch_operands = 0 : i64, tpu.core_type = #tpu.core_type<tc>, window_params = [{pipeline_mode = #tpu.pipeline_mode<synchronous>, transform_indices = @transform_0, window_bounds = array<i64: 6, 34, 34>}, {pipeline_mode = #tpu.pipeline_mode<synchronous>, transform_indices = @transform_1, window_bounds = array<i64: 6, 32, 32>}]} {
    %c0 = arith.constant 0 : index
    %c0_0 = arith.constant 0 : index
    %c0_1 = arith.constant 0 : index
    %0 = vector.load %arg1[%c0, %c0_0, %c0_1] : memref<6x34x34xf32, #tpu.memory_space<vmem>>, vector<6x32x34xf32>
    %c0_2 = arith.constant 0 : index
    %c1 = arith.constant 1 : index
    %c0_3 = arith.constant 0 : index
    %1 = vector.load %arg1[%c0_2, %c1, %c0_3] : memref<6x34x34xf32, #tpu.memory_space<vmem>>, vector<6x32x34xf32>
    %c0_4 = arith.constant 0 : index
    %c2 = arith.constant 2 : index
    %c0_5 = arith.constant 0 : index
    %2 = vector.load %arg1[%c0_4, %c2, %c0_5] : memref<6x34x34xf32, #tpu.memory_space<vmem>>, vector<6x32x34xf32>
    %3 = arith.minimumf %0, %1 : vector<6x32x34xf32>
    %4 = arith.maximumf %0, %1 : vector<6x32x34xf32>
    %5 = arith.minimumf %4, %2 : vector<6x32x34xf32>
    %6 = arith.maximumf %4, %2 : vector<6x32x34xf32>
    %7 = arith.minimumf %3, %5 : vector<6x32x34xf32>
    %8 = arith.maximumf %3, %5 : vector<6x32x34xf32>
    %9 = vector.extract_strided_slice %7 {offsets = [0, 0, 0], sizes = [6, 32, 32], strides = [1, 1, 1]} : vector<6x32x34xf32> to vector<6x32x32xf32>
    %10 = vector.extract_strided_slice %7 {offsets = [0, 0, 1], sizes = [6, 32, 32], strides = [1, 1, 1]} : vector<6x32x34xf32> to vector<6x32x32xf32>
    %11 = arith.maximumf %9, %10 : vector<6x32x32xf32>
    %12 = vector.extract_strided_slice %7 {offsets = [0, 0, 2], sizes = [6, 32, 32], strides = [1, 1, 1]} : vector<6x32x34xf32> to vector<6x32x32xf32>
    %13 = arith.maximumf %11, %12 : vector<6x32x32xf32>
    %14 = vector.extract_strided_slice %8 {offsets = [0, 0, 0], sizes = [6, 32, 32], strides = [1, 1, 1]} : vector<6x32x34xf32> to vector<6x32x32xf32>
    %15 = vector.extract_strided_slice %8 {offsets = [0, 0, 1], sizes = [6, 32, 32], strides = [1, 1, 1]} : vector<6x32x34xf32> to vector<6x32x32xf32>
    %16 = vector.extract_strided_slice %8 {offsets = [0, 0, 2], sizes = [6, 32, 32], strides = [1, 1, 1]} : vector<6x32x34xf32> to vector<6x32x32xf32>
    %17 = arith.minimumf %14, %15 : vector<6x32x32xf32>
    %18 = arith.maximumf %14, %15 : vector<6x32x32xf32>
    %19 = arith.minimumf %18, %16 : vector<6x32x32xf32>
    %20 = arith.maximumf %17, %19 : vector<6x32x32xf32>
    %21 = vector.extract_strided_slice %6 {offsets = [0, 0, 0], sizes = [6, 32, 32], strides = [1, 1, 1]} : vector<6x32x34xf32> to vector<6x32x32xf32>
    %22 = vector.extract_strided_slice %6 {offsets = [0, 0, 1], sizes = [6, 32, 32], strides = [1, 1, 1]} : vector<6x32x34xf32> to vector<6x32x32xf32>
    %23 = arith.minimumf %21, %22 : vector<6x32x32xf32>
    %24 = vector.extract_strided_slice %6 {offsets = [0, 0, 2], sizes = [6, 32, 32], strides = [1, 1, 1]} : vector<6x32x34xf32> to vector<6x32x32xf32>
    %25 = arith.minimumf %23, %24 : vector<6x32x32xf32>
    %26 = arith.minimumf %13, %20 : vector<6x32x32xf32>
    %27 = arith.maximumf %13, %20 : vector<6x32x32xf32>
    %28 = arith.minimumf %27, %25 : vector<6x32x32xf32>
    %29 = arith.maximumf %26, %28 : vector<6x32x32xf32>
    %30 = vector.extract_strided_slice %1 {offsets = [0, 0, 1], sizes = [6, 32, 32], strides = [1, 1, 1]} : vector<6x32x34xf32> to vector<6x32x32xf32>
    %31 = arith.subf %30, %29 : vector<6x32x32xf32>
    %c0_6 = arith.constant 0 : index
    %c0_7 = arith.constant 0 : index
    %c0_8 = arith.constant 0 : index
    %32 = vector.load %arg2[%c0_6, %c0_7, %c0_8] : memref<6x32x32xf32, #tpu.memory_space<vmem>>, vector<6x32x32xf32>
    tpu.vector_store %arg2[%c0_6, %c0_7, %c0_8], %31 {strides = array<i32>} : memref<6x32x32xf32, #tpu.memory_space<vmem>>, vector<6x32x32xf32>,
    return
  }
  func.func @transform_0(%arg0: i32) -> (i32, i32, i32) {
    %c0_i32 = arith.constant 0 : i32
    %c0_i32_0 = arith.constant 0 : i32
    %c0_i32_1 = arith.constant 0 : i32
    %c0_i32_2 = arith.constant 0 : i32
    return %c0_i32, %c0_i32_0, %c0_i32_1 : i32, i32, i32
  }
  func.func @transform_1(%arg0: i32) -> (i32, i32, i32) {
    %c0_i32 = arith.constant 0 : i32
    %c0_i32_0 = arith.constant 0 : i32
    %c0_i32_1 = arith.constant 0 : i32
    %c0_i32_2 = arith.constant 0 : i32
    return %c0_i32, %c0_i32_0, %c0_i32_1 : i32, i32, i32
  }
}

module attributes {stable_mosaic.version = 11 : i64} {
  func.func @_freq_update_kernel(%arg0: i32, %arg1: memref<4x192x34xf32, #tpu.memory_space<vmem>>, %arg2: memref<4x192x34xf32, #tpu.memory_space<vmem>>, %arg3: memref<192x34xf32, #tpu.memory_space<vmem>>) attributes {dimension_semantics = [#tpu.dimension_semantics<arbitrary>], iteration_bounds = array<i64: 1>, scalar_prefetch = 0 : i64, scratch_operands = 0 : i64, tpu.core_type = #tpu.core_type<tc>, window_params = [{pipeline_mode = #tpu.pipeline_mode<synchronous>, transform_indices = @transform_0, window_bounds = array<i64: 4, 192, 34>}, {pipeline_mode = #tpu.pipeline_mode<synchronous>, transform_indices = @transform_1, window_bounds = array<i64: 4, 192, 34>}, {pipeline_mode = #tpu.pipeline_mode<synchronous>, transform_indices = @transform_2, window_bounds = array<i64: 192, 34>}]} {
    %c1 = arith.constant 1 : index
    %c0 = arith.constant 0 : index
    %c0_0 = arith.constant 0 : index
    %0 = vector.load %arg2[%c1, %c0, %c0_0] : memref<4x192x34xf32, #tpu.memory_space<vmem>>, vector<1x192x34xf32>
    %1 = vector.shape_cast %0 : vector<1x192x34xf32> to vector<192x34xf32>
    %c1_1 = arith.constant 1 : index
    %c0_2 = arith.constant 0 : index
    %c0_3 = arith.constant 0 : index
    %2 = vector.load %arg1[%c1_1, %c0_2, %c0_3] : memref<4x192x34xf32, #tpu.memory_space<vmem>>, vector<1x192x34xf32>
    %3 = vector.shape_cast %2 : vector<1x192x34xf32> to vector<192x34xf32>
    %4 = arith.mulf %1, %3 : vector<192x34xf32>
    %c0_4 = arith.constant 0 : index
    %c0_5 = arith.constant 0 : index
    %c0_6 = arith.constant 0 : index
    %5 = vector.load %arg2[%c0_4, %c0_5, %c0_6] : memref<4x192x34xf32, #tpu.memory_space<vmem>>, vector<1x192x34xf32>
    %6 = vector.shape_cast %5 : vector<1x192x34xf32> to vector<192x34xf32>
    %c0_7 = arith.constant 0 : index
    %c0_8 = arith.constant 0 : index
    %c0_9 = arith.constant 0 : index
    %7 = vector.load %arg1[%c0_7, %c0_8, %c0_9] : memref<4x192x34xf32, #tpu.memory_space<vmem>>, vector<1x192x34xf32>
    %8 = vector.shape_cast %7 : vector<1x192x34xf32> to vector<192x34xf32>
    %9 = arith.mulf %6, %8 : vector<192x34xf32>
    %10 = arith.subf %4, %9 : vector<192x34xf32>
    %c2 = arith.constant 2 : index
    %c0_10 = arith.constant 0 : index
    %c0_11 = arith.constant 0 : index
    %11 = vector.load %arg2[%c2, %c0_10, %c0_11] : memref<4x192x34xf32, #tpu.memory_space<vmem>>, vector<1x192x34xf32>
    %12 = vector.shape_cast %11 : vector<1x192x34xf32> to vector<192x34xf32>
    %c2_12 = arith.constant 2 : index
    %c0_13 = arith.constant 0 : index
    %c0_14 = arith.constant 0 : index
    %13 = vector.load %arg1[%c2_12, %c0_13, %c0_14] : memref<4x192x34xf32, #tpu.memory_space<vmem>>, vector<1x192x34xf32>
    %14 = vector.shape_cast %13 : vector<1x192x34xf32> to vector<192x34xf32>
    %15 = arith.mulf %12, %14 : vector<192x34xf32>
    %16 = arith.subf %10, %15 : vector<192x34xf32>
    %c3 = arith.constant 3 : index
    %c0_15 = arith.constant 0 : index
    %c0_16 = arith.constant 0 : index
    %17 = vector.load %arg2[%c3, %c0_15, %c0_16] : memref<4x192x34xf32, #tpu.memory_space<vmem>>, vector<1x192x34xf32>
    %18 = vector.shape_cast %17 : vector<1x192x34xf32> to vector<192x34xf32>
    %c3_17 = arith.constant 3 : index
    %c0_18 = arith.constant 0 : index
    %c0_19 = arith.constant 0 : index
    %19 = vector.load %arg1[%c3_17, %c0_18, %c0_19] : memref<4x192x34xf32, #tpu.memory_space<vmem>>, vector<1x192x34xf32>
    %20 = vector.shape_cast %19 : vector<1x192x34xf32> to vector<192x34xf32>
    %21 = arith.mulf %18, %20 : vector<192x34xf32>
    %22 = arith.addf %16, %21 : vector<192x34xf32>
    %c0_20 = arith.constant 0 : index
    %c0_21 = arith.constant 0 : index
    %23 = vector.load %arg3[%c0_20, %c0_21] : memref<192x34xf32, #tpu.memory_space<vmem>>, vector<192x34xf32>
    tpu.vector_store %arg3[%c0_20, %c0_21], %22 {strides = array<i32>} : memref<192x34xf32, #tpu.memory_space<vmem>>, vector<192x34xf32>,
    return
  }
  func.func @transform_0(%arg0: i32) -> (i32, i32, i32) {
    %c0_i32 = arith.constant 0 : i32
    %c0_i32_0 = arith.constant 0 : i32
    %c0_i32_1 = arith.constant 0 : i32
    %c0_i32_2 = arith.constant 0 : i32
    return %c0_i32, %c0_i32_0, %c0_i32_1 : i32, i32, i32
  }
  func.func @transform_1(%arg0: i32) -> (i32, i32, i32) {
    %c0_i32 = arith.constant 0 : i32
    %c0_i32_0 = arith.constant 0 : i32
    %c0_i32_1 = arith.constant 0 : i32
    %c0_i32_2 = arith.constant 0 : i32
    return %c0_i32, %c0_i32_0, %c0_i32_1 : i32, i32, i32
  }
  func.func @transform_2(%arg0: i32) -> (i32, i32) {
    %c0_i32 = arith.constant 0 : i32
    %c0_i32_0 = arith.constant 0 : i32
    %c0_i32_1 = arith.constant 0 : i32
    return %c0_i32, %c0_i32_0 : i32, i32
  }
}

</mosaic_0001>

<llo_original>
// kernel: custom-call
$region0: #{custom-call}
  %s0 = inlined_call_operand.vmem [shape: c64[1,3,32,17], index: 0, kind: input, shape index: {}]
  %s1 = inlined_call_operand.vmem [shape: f32[1,3,32,17], index: 1, kind: output, shape index: {}]
  %v2 = vld [vmem:[%s0] sm:$0xff]
  %3 = vst [vmem:[%s1] sm:$0xff] %v2
  %s4 = scalar_lea.vmem %s1, 8
  %s5 = scalar_lea.vmem %s0, 8
  %v6 = vld [vmem:[%s5] sm:$0xff]
  %7 = vst [vmem:[%s4] sm:$0xff] %v6
  %s8 = scalar_lea.vmem %s1, 16
  %s9 = scalar_lea.vmem %s0, 16
  %v10 = vld [vmem:[%s9] sm:$0xff]
  %11 = vst [vmem:[%s8] sm:$0xff] %v10
  %s12 = scalar_lea.vmem %s1, 24
  %s13 = scalar_lea.vmem %s0, 24
  %v14 = vld [vmem:[%s13] sm:$0xff]
  %15 = vst [vmem:[%s12] sm:$0xff] %v14
  %s16 = scalar_lea.vmem %s1, 32
  %s17 = scalar_lea.vmem %s0, 32
  %v18 = vld [vmem:[%s17] sm:$0xff]
  %19 = vst [vmem:[%s16] sm:$0xff] %v18
  %s20 = scalar_lea.vmem %s1, 40
  %s21 = scalar_lea.vmem %s0, 40
  %v22 = vld [vmem:[%s21] sm:$0xff]
  %23 = vst [vmem:[%s20] sm:$0xff] %v22
  %s24 = scalar_lea.vmem %s1, 48
  %s25 = scalar_lea.vmem %s0, 48
  %v26 = vld [vmem:[%s25] sm:$0xff]
  %27 = vst [vmem:[%s24] sm:$0xff] %v26
  %s28 = scalar_lea.vmem %s1, 56
  %s29 = scalar_lea.vmem %s0, 56
  %v30 = vld [vmem:[%s29] sm:$0xff]
  %31 = vst [vmem:[%s28] sm:$0xff] %v30
  %s32 = scalar_lea.vmem %s1, 64
  %s33 = scalar_lea.vmem %s0, 64
  %v34 = vld [vmem:[%s33] sm:$0xff]
  %35 = vst [vmem:[%s32] sm:$0xff] %v34

// kernel: custom-call.1
$region0: #{custom-call.1}
  %s0 = inlined_call_operand.vmem [shape: c64[1,3,32,17], index: 0, kind: input, shape index: {}]
  %s1 = inlined_call_operand.vmem [shape: f32[1,3,32,17], index: 1, kind: output, shape index: {}]
  %s2 = scalar_lea.vmem %s0, 72
  %v3 = vld [vmem:[%s2] sm:$0xff]
  %4 = vst [vmem:[%s1] sm:$0xff] %v3
  %s5 = scalar_lea.vmem %s1, 8
  %s6 = scalar_lea.vmem %s2, 8
  %v7 = vld [vmem:[%s6] sm:$0xff]
  %8 = vst [vmem:[%s5] sm:$0xff] %v7
  %s9 = scalar_lea.vmem %s1, 16
  %s10 = scalar_lea.vmem %s2, 16
  %v11 = vld [vmem:[%s10] sm:$0xff]
  %12 = vst [vmem:[%s9] sm:$0xff] %v11
  %s13 = scalar_lea.vmem %s1, 24
  %s14 = scalar_lea.vmem %s2, 24
  %v15 = vld [vmem:[%s14] sm:$0xff]
  %16 = vst [vmem:[%s13] sm:$0xff] %v15
  %s17 = scalar_lea.vmem %s1, 32
  %s18 = scalar_lea.vmem %s2, 32
  %v19 = vld [vmem:[%s18] sm:$0xff]
  %20 = vst [vmem:[%s17] sm:$0xff] %v19
  %s21 = scalar_lea.vmem %s1, 40
  %s22 = scalar_lea.vmem %s2, 40
  %v23 = vld [vmem:[%s22] sm:$0xff]
  %24 = vst [vmem:[%s21] sm:$0xff] %v23
  %s25 = scalar_lea.vmem %s1, 48
  %s26 = scalar_lea.vmem %s2, 48
  %v27 = vld [vmem:[%s26] sm:$0xff]
  %28 = vst [vmem:[%s25] sm:$0xff] %v27
  %s29 = scalar_lea.vmem %s1, 56
  %s30 = scalar_lea.vmem %s2, 56
  %v31 = vld [vmem:[%s30] sm:$0xff]
  %32 = vst [vmem:[%s29] sm:$0xff] %v31
  %s33 = scalar_lea.vmem %s1, 64
  %s34 = scalar_lea.vmem %s2, 64
  %v35 = vld [vmem:[%s34] sm:$0xff]
  %36 = vst [vmem:[%s33] sm:$0xff] %v35

// kernel: pula_iterator_forward.2
$region0: #{pula_iterator_forward.2}
  #allocation0 [shape = 'u32[]', space=smem, size = 0x4, offset = 0x4, fixed_abs, tag = 'smem constant byte address 0x4 - core index']
  #allocation1 [shape = 'u32[144,128]{1,0:T(1,128)}', space=vmem, size = 0x12000, scoped, tag = 'internal scratch']
  %s0 = inlined_call_operand.vmem [shape: f32[6,34,34], index: 0, kind: input, shape index: {}]
  %s1 = inlined_call_operand.vmem [shape: f32[6,32,32], index: 1, kind: output, shape index: {}]
  %s2 = sld [smem:[#allocation0]]
  $region14: #{pula_iterator_forward.2} parent=0
    _
  %s4 = ssub.s32 1, %s2
  %s5 = scalar_select 0, %s4, %s2
  // Predicated region
  $region2: #{pula_iterator_forward.2} parent=0 // pred_check
    _
  $region3: #{pula_iterator_forward.2} parent=0 // pred_check_branch
    %7 = sbr.rel (0) target = $region5
  $region4: #{pula_iterator_forward.2} parent=0 // pred_region
    _
  $region5: #{pula_iterator_forward.2} parent=0 // pred_fallthru
    _
  %v8 = vld [vmem:[%s0] sm:$0xff]
  %v9 = vld [vmem:[%s0 + $0x8] sm:$0xff]
  %v10 = vld [vmem:[%s0 + $0x10] sm:$0xff]
  %v11 = vld [vmem:[%s0 + $0x18] sm:$0xff]
  %v12 = vld [vmem:[%s0 + $0x28] sm:$0xff]
  %v13 = vld [vmem:[%s0 + $0x30] sm:$0xff]
  %v14 = vld [vmem:[%s0 + $0x38] sm:$0xff]
  %v15 = vld [vmem:[%s0 + $0x40] sm:$0xff]
  %v16 = vld [vmem:[%s0 + $0x50] sm:$0xff]
  %v17 = vld [vmem:[%s0 + $0x58] sm:$0xff]
  %v18 = vld [vmem:[%s0 + $0x60] sm:$0xff]
  %v19 = vld [vmem:[%s0 + $0x68] sm:$0xff]
  %v20 = vld [vmem:[%s0 + $0x78] sm:$0xff]
  %v21 = vld [vmem:[%s0 + $0x80] sm:$0xff]
  %v22 = vld [vmem:[%s0 + $0x88] sm:$0xff]
  %v23 = vld [vmem:[%s0 + $0x90] sm:$0xff]
  %v24 = vld [vmem:[%s0 + $0xa0] sm:$0xff]
  %v25 = vld [vmem:[%s0 + $0xa8] sm:$0xff]
  %v26 = vld [vmem:[%s0 + $0xb0] sm:$0xff]
  %v27 = vld [vmem:[%s0 + $0xb8] sm:$0xff]
  %v28 = vld [vmem:[%s0 + $0xc8] sm:$0xff]
  %v29 = vld [vmem:[%s0 + $0xd0] sm:$0xff]
  %v30 = vld [vmem:[%s0 + $0xd8] sm:$0xff]
  %v31 = vld [vmem:[%s0 + $0xe0] sm:$0xff]
  %v32 = vld [vmem:[%s0 + $0x1] sm:$0xff]
  %v33 = vld [vmem:[%s0 + $0x9] sm:$0xff]
  %v34 = vld [vmem:[%s0 + $0x11] sm:$0xff]
  %v35 = vld [vmem:[%s0 + $0x19] sm:$0xff]
  %v36 = vld [vmem:[%s0 + $0x29] sm:$0xff]
  %v37 = vld [vmem:[%s0 + $0x31] sm:$0xff]
  %v38 = vld [vmem:[%s0 + $0x39] sm:$0xff]
  %v39 = vld [vmem:[%s0 + $0x41] sm:$0xff]
  %v40 = vld [vmem:[%s0 + $0x51] sm:$0xff]
  %v41 = vld [vmem:[%s0 + $0x59] sm:$0xff]
  %v42 = vld [vmem:[%s0 + $0x61] sm:$0xff]
  %v43 = vld [vmem:[%s0 + $0x69] sm:$0xff]
  %v44 = vld [vmem:[%s0 + $0x79] sm:$0xff]
  %v45 = vld [vmem:[%s0 + $0x81] sm:$0xff]
  %v46 = vld [vmem:[%s0 + $0x89] sm:$0xff]
  %v47 = vld [vmem:[%s0 + $0x91] sm:$0xff]
  %v48 = vld [vmem:[%s0 + $0xa1] sm:$0xff]
  %v49 = vld [vmem:[%s0 + $0xa9] sm:$0xff]
  %v50 = vld [vmem:[%s0 + $0xb1] sm:$0xff]
  %v51 = vld [vmem:[%s0 + $0xb9] sm:$0xff]
  %v52 = vld [vmem:[%s0 + $0xc9] sm:$0xff]
  %v53 = vld [vmem:[%s0 + $0xd1] sm:$0xff]
  %v54 = vld [vmem:[%s0 + $0xd9] sm:$0xff]
  %v55 = vld [vmem:[%s0 + $0xe1] sm:$0xff]
  %v56 = vld [vmem:[%s0 + $0x2] sm:$0xff]
  %v57 = vld [vmem:[%s0 + $0xa] sm:$0xff]
  %v58 = vld [vmem:[%s0 + $0x12] sm:$0xff]
  %v59 = vld [vmem:[%s0 + $0x1a] sm:$0xff]
  %v60 = vld [vmem:[%s0 + $0x2a] sm:$0xff]
  %v61 = vld [vmem:[%s0 + $0x32] sm:$0xff]
  %v62 = vld [vmem:[%s0 + $0x3a] sm:$0xff]
  %v63 = vld [vmem:[%s0 + $0x42] sm:$0xff]
  %v64 = vld [vmem:[%s0 + $0x52] sm:$0xff]
  %v65 = vld [vmem:[%s0 + $0x5a] sm:$0xff]
  %v66 = vld [vmem:[%s0 + $0x62] sm:$0xff]
  %v67 = vld [vmem:[%s0 + $0x6a] sm:$0xff]
  %v68 = vld [vmem:[%s0 + $0x7a] sm:$0xff]
  %v69 = vld [vmem:[%s0 + $0x82] sm:$0xff]
  %v70 = vld [vmem:[%s0 + $0x8a] sm:$0xff]
  %v71 = vld [vmem:[%s0 + $0x92] sm:$0xff]
  %v72 = vld [vmem:[%s0 + $0xa2] sm:$0xff]
  %v73 = vld [vmem:[%s0 + $0xaa] sm:$0xff]
  %v74 = vld [vmem:[%s0 + $0xb2] sm:$0xff]
  %v75 = vld [vmem:[%s0 + $0xba] sm:$0xff]
  %v76 = vld [vmem:[%s0 + $0xca] sm:$0xff]
  %v77 = vld [vmem:[%s0 + $0xd2] sm:$0xff]
  %v78 = vld [vmem:[%s0 + $0xda] sm:$0xff]
  %v79 = vld [vmem:[%s0 + $0xe2] sm:$0xff]
  %v80 = vmin.f32 %v8, %v32
  %v81 = vmin.f32 %v9, %v33
  %v82 = vmin.f32 %v10, %v34
  %v83 = vmin.f32 %v11, %v35
  %v84 = vmin.f32 %v12, %v36
  %v85 = vmin.f32 %v13, %v37
  %v86 = vmin.f32 %v14, %v38
  %v87 = vmin.f32 %v15, %v39
  %v88 = vmin.f32 %v16, %v40
  %v89 = vmin.f32 %v17, %v41
  %v90 = vmin.f32 %v18, %v42
  %v91 = vmin.f32 %v19, %v43
  %v92 = vmin.f32 %v20, %v44
  %v93 = vmin.f32 %v21, %v45
  %v94 = vmin.f32 %v22, %v46
  %v95 = vmin.f32 %v23, %v47
  %v96 = vmin.f32 %v24, %v48
  %v97 = vmin.f32 %v25, %v49
  %v98 = vmin.f32 %v26, %v50
  %v99 = vmin.f32 %v27, %v51
  %v100 = vmin.f32 %v28, %v52
  %v101 = vmin.f32 %v29, %v53
  %v102 = vmin.f32 %v30, %v54
  %v103 = vmin.f32 %v31, %v55
  %v104 = vmax.f32 %v8, %v32
  %v105 = vmax.f32 %v9, %v33
  %v106 = vmax.f32 %v10, %v34
  %v107 = vmax.f32 %v11, %v35
  %v108 = vmax.f32 %v12, %v36
  %v109 = vmax.f32 %v13, %v37
  %v110 = vmax.f32 %v14, %v38
  %v111 = vmax.f32 %v15, %v39
  %v112 = vmax.f32 %v16, %v40
  %v113 = vmax.f32 %v17, %v41
  %v114 = vmax.f32 %v18, %v42
  %v115 = vmax.f32 %v19, %v43
  %v116 = vmax.f32 %v20, %v44
  %v117 = vmax.f32 %v21, %v45
  %v118 = vmax.f32 %v22, %v46
  %v119 = vmax.f32 %v23, %v47
  %v120 = vmax.f32 %v24, %v48
  %v121 = vmax.f32 %v25, %v49
  %v122 = vmax.f32 %v26, %v50
  %v123 = vmax.f32 %v27, %v51
  %v124 = vmax.f32 %v28, %v52
  %v125 = vmax.f32 %v29, %v53
  %v126 = vmax.f32 %v30, %v54
  %v127 = vmax.f32 %v31, %v55
  %v128 = vmin.f32 %v104, %v56
  %v129 = vmin.f32 %v105, %v57
  %v130 = vmin.f32 %v106, %v58
  %v131 = vmin.f32 %v107, %v59
  %v132 = vmin.f32 %v108, %v60
  %v133 = vmin.f32 %v109, %v61
  %v134 = vmin.f32 %v110, %v62
  %v135 = vmin.f32 %v111, %v63
  %v136 = vmin.f32 %v112, %v64
  %v137 = vmin.f32 %v113, %v65
  %v138 = vmin.f32 %v114, %v66
  %v139 = vmin.f32 %v115, %v67
  %v140 = vmin.f32 %v116, %v68
  %v141 = vmin.f32 %v117, %v69
  %v142 = vmin.f32 %v118, %v70
  %v143 = vmin.f32 %v119, %v71
  %v144 = vmin.f32 %v120, %v72
  %v145 = vmin.f32 %v121, %v73
  %v146 = vmin.f32 %v122, %v74
  %v147 = vmin.f32 %v123, %v75
  %v148 = vmin.f32 %v124, %v76
  %v149 = vmin.f32 %v125, %v77
  %v150 = vmin.f32 %v126, %v78
  %v151 = vmin.f32 %v127, %v79
  %v152 = vmax.f32 %v104, %v56
  %v153 = vmax.f32 %v105, %v57
  %v154 = vmax.f32 %v106, %v58
  %v155 = vmax.f32 %v107, %v59
  %v156 = vmax.f32 %v108, %v60
  %v157 = vmax.f32 %v109, %v61
  %v158 = vmax.f32 %v110, %v62
  %v159 = vmax.f32 %v111, %v63
  %v160 = vmax.f32 %v112, %v64
  %v161 = vmax.f32 %v113, %v65
  %v162 = vmax.f32 %v114, %v66
  %v163 = vmax.f32 %v115, %v67
  %v164 = vmax.f32 %v116, %v68
  %v165 = vmax.f32 %v117, %v69
  %v166 = vmax.f32 %v118, %v70
  %v167 = vmax.f32 %v119, %v71
  %v168 = vmax.f32 %v120, %v72
  %v169 = vmax.f32 %v121, %v73
  %v170 = vmax.f32 %v122, %v74
  %v171 = vmax.f32 %v123, %v75
  %v172 = vmax.f32 %v124, %v76
  %v173 = vmax.f32 %v125, %v77
  %v174 = vmax.f32 %v126, %v78
  %v175 = vmax.f32 %v127, %v79
  %v176 = vmin.f32 %v80, %v128
  %v177 = vmin.f32 %v81, %v129
  %v178 = vmin.f32 %v82, %v130
  %v179 = vmin.f32 %v83, %v131
  %v180 = vmin.f32 %v84, %v132
  %v181 = vmin.f32 %v85, %v133
  %v182 = vmin.f32 %v86, %v134
  %v183 = vmin.f32 %v87, %v135
  %v184 = vmin.f32 %v88, %v136
  %v185 = vmin.f32 %v89, %v137
  %v186 = vmin.f32 %v90, %v138
  %v187 = vmin.f32 %v91, %v139
  %v188 = vmin.f32 %v92, %v140
  %v189 = vmin.f32 %v93, %v141
  %v190 = vmin.f32 %v94, %v142
  %v191 = vmin.f32 %v95, %v143
  %v192 = vmin.f32 %v96, %v144
  %v193 = vmin.f32 %v97, %v145
  %v194 = vmin.f32 %v98, %v146
  %v195 = vmin.f32 %v99, %v147
  %v196 = vmin.f32 %v100, %v148
  %v197 = vmin.f32 %v101, %v149
  %v198 = vmin.f32 %v102, %v150
  %v199 = vmin.f32 %v103, %v151
  %v200 = vmax.f32 %v80, %v128
  %v201 = vmax.f32 %v81, %v129
  %v202 = vmax.f32 %v82, %v130
  %v203 = vmax.f32 %v83, %v131
  %v204 = vmax.f32 %v84, %v132
  %v205 = vmax.f32 %v85, %v133
  %v206 = vmax.f32 %v86, %v134
  %v207 = vmax.f32 %v87, %v135
  %v208 = vmax.f32 %v88, %v136
  %v209 = vmax.f32 %v89, %v137
  %v210 = vmax.f32 %v90, %v138
  %v211 = vmax.f32 %v91, %v139
  %v212 = vmax.f32 %v92, %v140
  %v213 = vmax.f32 %v93, %v141
  %v214 = vmax.f32 %v94, %v142
  %v215 = vmax.f32 %v95, %v143
  %v216 = vmax.f32 %v96, %v144
  %v217 = vmax.f32 %v97, %v145
  %v218 = vmax.f32 %v98, %v146
  %v219 = vmax.f32 %v99, %v147
  %v220 = vmax.f32 %v100, %v148
  %v221 = vmax.f32 %v101, %v149
  %v222 = vmax.f32 %v102, %v150
  %v223 = vmax.f32 %v103, %v151
  %248 = vrot.lane.b32.xlu0 %v176, 127
  %v249 = vpop.permute.xlu0 %248
  %250 = vrot.lane.b32.xlu0 %v177, 127
  %v251 = vpop.permute.xlu0 %250
  %252 = vrot.lane.b32.xlu0 %v178, 127
  %v253 = vpop.permute.xlu0 %252
  %254 = vrot.lane.b32.xlu0 %v179, 127
  %v255 = vpop.permute.xlu0 %254
  %256 = vrot.lane.b32.xlu0 %v180, 127
  %v257 = vpop.permute.xlu0 %256
  %258 = vrot.lane.b32.xlu0 %v181, 127
  %v259 = vpop.permute.xlu0 %258
  %260 = vrot.lane.b32.xlu0 %v182, 127
  %v261 = vpop.permute.xlu0 %260
  %262 = vrot.lane.b32.xlu0 %v183, 127
  %v263 = vpop.permute.xlu0 %262
  %264 = vrot.lane.b32.xlu0 %v184, 127
  %v265 = vpop.permute.xlu0 %264
  %266 = vrot.lane.b32.xlu0 %v185, 127
  %v267 = vpop.permute.xlu0 %266
  %268 = vrot.lane.b32.xlu0 %v186, 127
  %v269 = vpop.permute.xlu0 %268
  %270 = vrot.lane.b32.xlu0 %v187, 127
  %v271 = vpop.permute.xlu0 %270
  %272 = vrot.lane.b32.xlu0 %v188, 127
  %v273 = vpop.permute.xlu0 %272
  %274 = vrot.lane.b32.xlu0 %v189, 127
  %v275 = vpop.permute.xlu0 %274
  %276 = vrot.lane.b32.xlu0 %v190, 127
  %v277 = vpop.permute.xlu0 %276
  %278 = vrot.lane.b32.xlu0 %v191, 127
  %v279 = vpop.permute.xlu0 %278
  %280 = vrot.lane.b32.xlu0 %v192, 127
  %v281 = vpop.permute.xlu0 %280
  %282 = vrot.lane.b32.xlu0 %v193, 127
  %v283 = vpop.permute.xlu0 %282
  %284 = vrot.lane.b32.xlu0 %v194, 127
  %v285 = vpop.permute.xlu0 %284
  %286 = vrot.lane.b32.xlu0 %v195, 127
  %v287 = vpop.permute.xlu0 %286
  %288 = vrot.lane.b32.xlu0 %v196, 127
  %v289 = vpop.permute.xlu0 %288
  %290 = vrot.lane.b32.xlu0 %v197, 127
  %v291 = vpop.permute.xlu0 %290
  %292 = vrot.lane.b32.xlu0 %v198, 127
  %v293 = vpop.permute.xlu0 %292
  %294 = vrot.lane.b32.xlu0 %v199, 127
  %v295 = vpop.permute.xlu0 %294
  %v320 = vmax.f32 %v176, %v249
  %v321 = vmax.f32 %v177, %v251
  %v322 = vmax.f32 %v178, %v253
  %v323 = vmax.f32 %v179, %v255
  %v324 = vmax.f32 %v180, %v257
  %v325 = vmax.f32 %v181, %v259
  %v326 = vmax.f32 %v182, %v261
  %v327 = vmax.f32 %v183, %v263
  %v328 = vmax.f32 %v184, %v265
  %v329 = vmax.f32 %v185, %v267
  %v330 = vmax.f32 %v186, %v269
  %v331 = vmax.f32 %v187, %v271
  %v332 = vmax.f32 %v188, %v273
  %v333 = vmax.f32 %v189, %v275
  %v334 = vmax.f32 %v190, %v277
  %v335 = vmax.f32 %v191, %v279
  %v336 = vmax.f32 %v192, %v281
  %v337 = vmax.f32 %v193, %v283
  %v338 = vmax.f32 %v194, %v285
  %v339 = vmax.f32 %v195, %v287
  %v340 = vmax.f32 %v196, %v289
  %v341 = vmax.f32 %v197, %v291
  %v342 = vmax.f32 %v198, %v293
  %v343 = vmax.f32 %v199, %v295
  %344 = vrot.lane.b32.xlu0 %v176, 126
  %v345 = vpop.permute.xlu0 %344
  %346 = vrot.lane.b32.xlu0 %v177, 126
  %v347 = vpop.permute.xlu0 %346
  %348 = vrot.lane.b32.xlu0 %v178, 126
  %v349 = vpop.permute.xlu0 %348
  %350 = vrot.lane.b32.xlu0 %v179, 126
  %v351 = vpop.permute.xlu0 %350
  %352 = vrot.lane.b32.xlu0 %v180, 126
  %v353 = vpop.permute.xlu0 %352
  %354 = vrot.lane.b32.xlu0 %v181, 126
  %v355 = vpop.permute.xlu0 %354
  %356 = vrot.lane.b32.xlu0 %v182, 126
  %v357 = vpop.permute.xlu0 %356
  %358 = vrot.lane.b32.xlu0 %v183, 126
  %v359 = vpop.permute.xlu0 %358
  %360 = vrot.lane.b32.xlu0 %v184, 126
  %v361 = vpop.permute.xlu0 %360
  %362 = vrot.lane.b32.xlu0 %v185, 126
  %v363 = vpop.permute.xlu0 %362
  %364 = vrot.lane.b32.xlu0 %v186, 126
  %v365 = vpop.permute.xlu0 %364
  %366 = vrot.lane.b32.xlu0 %v187, 126
  %v367 = vpop.permute.xlu0 %366
  %368 = vrot.lane.b32.xlu0 %v188, 126
  %v369 = vpop.permute.xlu0 %368
  %370 = vrot.lane.b32.xlu0 %v189, 126
  %v371 = vpop.permute.xlu0 %370
  %372 = vrot.lane.b32.xlu0 %v190, 126
  %v373 = vpop.permute.xlu0 %372
  %374 = vrot.lane.b32.xlu0 %v191, 126
  %v375 = vpop.permute.xlu0 %374
  %376 = vrot.lane.b32.xlu0 %v192, 126
  %v377 = vpop.permute.xlu0 %376
  %378 = vrot.lane.b32.xlu0 %v193, 126
  %v379 = vpop.permute.xlu0 %378
  %380 = vrot.lane.b32.xlu0 %v194, 126
  %v381 = vpop.permute.xlu0 %380
  %382 = vrot.lane.b32.xlu0 %v195, 126
  %v383 = vpop.permute.xlu0 %382
  %384 = vrot.lane.b32.xlu0 %v196, 126
  %v385 = vpop.permute.xlu0 %384
  %386 = vrot.lane.b32.xlu0 %v197, 126
  %v387 = vpop.permute.xlu0 %386
  %388 = vrot.lane.b32.xlu0 %v198, 126
  %v389 = vpop.permute.xlu0 %388
  %390 = vrot.lane.b32.xlu0 %v199, 126
  %v391 = vpop.permute.xlu0 %390
  %v416 = vmax.f32 %v320, %v345
  %v417 = vmax.f32 %v321, %v347
  %v418 = vmax.f32 %v322, %v349
  %v419 = vmax.f32 %v323, %v351
  %v420 = vmax.f32 %v324, %v353
  %v421 = vmax.f32 %v325, %v355
  %v422 = vmax.f32 %v326, %v357
  %v423 = vmax.f32 %v327, %v359
  %v424 = vmax.f32 %v328, %v361
  %v425 = vmax.f32 %v329, %v363
  %v426 = vmax.f32 %v330, %v365
  %v427 = vmax.f32 %v331, %v367
  %v428 = vmax.f32 %v332, %v369
  %v429 = vmax.f32 %v333, %v371
  %v430 = vmax.f32 %v334, %v373
  %v431 = vmax.f32 %v335, %v375
  %v432 = vmax.f32 %v336, %v377
  %v433 = vmax.f32 %v337, %v379
  %v434 = vmax.f32 %v338, %v381
  %v435 = vmax.f32 %v339, %v383
  %v436 = vmax.f32 %v340, %v385
  %v437 = vmax.f32 %v341, %v387
  %v438 = vmax.f32 %v342, %v389
  %v439 = vmax.f32 %v343, %v391
  %464 = vrot.lane.b32.xlu0 %v200, 127
  %v465 = vpop.permute.xlu0 %464
  %466 = vrot.lane.b32.xlu0 %v201, 127
  %v467 = vpop.permute.xlu0 %466
  %468 = vrot.lane.b32.xlu0 %v202, 127
  %v469 = vpop.permute.xlu0 %468
  %470 = vrot.lane.b32.xlu0 %v203, 127
  %v471 = vpop.permute.xlu0 %470
  %472 = vrot.lane.b32.xlu0 %v204, 127
  %v473 = vpop.permute.xlu0 %472
  %474 = vrot.lane.b32.xlu0 %v205, 127
  %v475 = vpop.permute.xlu0 %474
  %476 = vrot.lane.b32.xlu0 %v206, 127
  %v477 = vpop.permute.xlu0 %476
  %478 = vrot.lane.b32.xlu0 %v207, 127
  %v479 = vpop.permute.xlu0 %478
  %480 = vrot.lane.b32.xlu0 %v208, 127
  %v481 = vpop.permute.xlu0 %480
  %482 = vrot.lane.b32.xlu0 %v209, 127
  %v483 = vpop.permute.xlu0 %482
  %484 = vrot.lane.b32.xlu0 %v210, 127
  %v485 = vpop.permute.xlu0 %484
  %486 = vrot.lane.b32.xlu0 %v211, 127
  %v487 = vpop.permute.xlu0 %486
  %488 = vrot.lane.b32.xlu0 %v212, 127
  %v489 = vpop.permute.xlu0 %488
  %490 = vrot.lane.b32.xlu0 %v213, 127
  %v491 = vpop.permute.xlu0 %490
  %492 = vrot.lane.b32.xlu0 %v214, 127
  %v493 = vpop.permute.xlu0 %492
  %494 = vrot.lane.b32.xlu0 %v215, 127
  %v495 = vpop.permute.xlu0 %494
  %496 = vrot.lane.b32.xlu0 %v216, 127
  %v497 = vpop.permute.xlu0 %496
  %498 = vrot.lane.b32.xlu0 %v217, 127
  %v499 = vpop.permute.xlu0 %498
  %500 = vrot.lane.b32.xlu0 %v218, 127
  %v501 = vpop.permute.xlu0 %500
  %502 = vrot.lane.b32.xlu0 %v219, 127
  %v503 = vpop.permute.xlu0 %502
  %504 = vrot.lane.b32.xlu0 %v220, 127
  %v505 = vpop.permute.xlu0 %504
  %506 = vrot.lane.b32.xlu0 %v221, 127
  %v507 = vpop.permute.xlu0 %506
  %508 = vrot.lane.b32.xlu0 %v222, 127
  %v509 = vpop.permute.xlu0 %508
  %510 = vrot.lane.b32.xlu0 %v223, 127
  %v511 = vpop.permute.xlu0 %510
  %v536 = vmin.f32 %v200, %v465
  %v537 = vmin.f32 %v201, %v467
  %v538 = vmin.f32 %v202, %v469
  %v539 = vmin.f32 %v203, %v471
  %v540 = vmin.f32 %v204, %v473
  %v541 = vmin.f32 %v205, %v475
  %v542 = vmin.f32 %v206, %v477
  %v543 = vmin.f32 %v207, %v479
  %v544 = vmin.f32 %v208, %v481
  %v545 = vmin.f32 %v209, %v483
  %v546 = vmin.f32 %v210, %v485
  %v547 = vmin.f32 %v211, %v487
  %v548 = vmin.f32 %v212, %v489
  %v549 = vmin.f32 %v213, %v491
  %v550 = vmin.f32 %v214, %v493
  %v551 = vmin.f32 %v215, %v495
  %v552 = vmin.f32 %v216, %v497
  %v553 = vmin.f32 %v217, %v499
  %v554 = vmin.f32 %v218, %v501
  %v555 = vmin.f32 %v219, %v503
  %v556 = vmin.f32 %v220, %v505
  %v557 = vmin.f32 %v221, %v507
  %v558 = vmin.f32 %v222, %v509
  %v559 = vmin.f32 %v223, %v511
  %v560 = vmax.f32 %v200, %v465
  %v561 = vmax.f32 %v201, %v467
  %v562 = vmax.f32 %v202, %v469
  %v563 = vmax.f32 %v203, %v471
  %v564 = vmax.f32 %v204, %v473
  %v565 = vmax.f32 %v205, %v475
  %v566 = vmax.f32 %v206, %v477
  %v567 = vmax.f32 %v207, %v479
  %v568 = vmax.f32 %v208, %v481
  %v569 = vmax.f32 %v209, %v483
  %v570 = vmax.f32 %v210, %v485
  %v571 = vmax.f32 %v211, %v487
  %v572 = vmax.f32 %v212, %v489
  %v573 = vmax.f32 %v213, %v491
  %v574 = vmax.f32 %v214, %v493
  %v575 = vmax.f32 %v215, %v495
  %v576 = vmax.f32 %v216, %v497
  %v577 = vmax.f32 %v217, %v499
  %v578 = vmax.f32 %v218, %v501
  %v579 = vmax.f32 %v219, %v503
  %v580 = vmax.f32 %v220, %v505
  %v581 = vmax.f32 %v221, %v507
  %v582 = vmax.f32 %v222, %v509
  %v583 = vmax.f32 %v223, %v511
  %584 = vrot.lane.b32.xlu0 %v200, 126
  %v585 = vpop.permute.xlu0 %584
  %586 = vrot.lane.b32.xlu0 %v201, 126
  %v587 = vpop.permute.xlu0 %586
  %588 = vrot.lane.b32.xlu0 %v202, 126
  %v589 = vpop.permute.xlu0 %588
  %590 = vrot.lane.b32.xlu0 %v203, 126
  %v591 = vpop.permute.xlu0 %590
  %592 = vrot.lane.b32.xlu0 %v204, 126
  %v593 = vpop.permute.xlu0 %592
  %594 = vrot.lane.b32.xlu0 %v205, 126
  %v595 = vpop.permute.xlu0 %594
  %596 = vrot.lane.b32.xlu0 %v206, 126
  %v597 = vpop.permute.xlu0 %596
  %598 = vrot.lane.b32.xlu0 %v207, 126
  %v599 = vpop.permute.xlu0 %598
  %600 = vrot.lane.b32.xlu0 %v208, 126
  %v601 = vpop.permute.xlu0 %600
  %602 = vrot.lane.b32.xlu0 %v209, 126
  %v603 = vpop.permute.xlu0 %602
  %604 = vrot.lane.b32.xlu0 %v210, 126
  %v605 = vpop.permute.xlu0 %604
  %606 = vrot.lane.b32.xlu0 %v211, 126
  %v607 = vpop.permute.xlu0 %606
  %608 = vrot.lane.b32.xlu0 %v212, 126
  %v609 = vpop.permute.xlu0 %608
  %610 = vrot.lane.b32.xlu0 %v213, 126
  %v611 = vpop.permute.xlu0 %610
  %612 = vrot.lane.b32.xlu0 %v214, 126
  %v613 = vpop.permute.xlu0 %612
  %614 = vrot.lane.b32.xlu0 %v215, 126
  %v615 = vpop.permute.xlu0 %614
  %616 = vrot.lane.b32.xlu0 %v216, 126
  %v617 = vpop.permute.xlu0 %616
  %618 = vrot.lane.b32.xlu0 %v217, 126
  %v619 = vpop.permute.xlu0 %618
  %620 = vrot.lane.b32.xlu0 %v218, 126
  %v621 = vpop.permute.xlu0 %620
  %622 = vrot.lane.b32.xlu0 %v219, 126
  %v623 = vpop.permute.xlu0 %622
  %624 = vrot.lane.b32.xlu0 %v220, 126
  %v625 = vpop.permute.xlu0 %624
  %626 = vrot.lane.b32.xlu0 %v221, 126
  %v627 = vpop.permute.xlu0 %626
  %628 = vrot.lane.b32.xlu0 %v222, 126
  %v629 = vpop.permute.xlu0 %628
  %630 = vrot.lane.b32.xlu0 %v223, 126
  %v631 = vpop.permute.xlu0 %630
  %v656 = vmin.f32 %v560, %v585
  %v657 = vmin.f32 %v561, %v587
  %v658 = vmin.f32 %v562, %v589
  %v659 = vmin.f32 %v563, %v591
  %v660 = vmin.f32 %v564, %v593
  %v661 = vmin.f32 %v565, %v595
  %v662 = vmin.f32 %v566, %v597
  %v663 = vmin.f32 %v567, %v599
  %v664 = vmin.f32 %v568, %v601
  %v665 = vmin.f32 %v569, %v603
  %v666 = vmin.f32 %v570, %v605
  %v667 = vmin.f32 %v571, %v607
  %v668 = vmin.f32 %v572, %v609
  %v669 = vmin.f32 %v573, %v611
  %v670 = vmin.f32 %v574, %v613
  %v671 = vmin.f32 %v575, %v615
  %v672 = vmin.f32 %v576, %v617
  %v673 = vmin.f32 %v577, %v619
  %v674 = vmin.f32 %v578, %v621
  %v675 = vmin.f32 %v579, %v623
  %v676 = vmin.f32 %v580, %v625
  %v677 = vmin.f32 %v581, %v627
  %v678 = vmin.f32 %v582, %v629
  %v679 = vmin.f32 %v583, %v631
  %v680 = vmax.f32 %v536, %v656
  %v681 = vmax.f32 %v537, %v657
  %v682 = vmax.f32 %v538, %v658
  %v683 = vmax.f32 %v539, %v659
  %v684 = vmax.f32 %v540, %v660
  %v685 = vmax.f32 %v541, %v661
  %v686 = vmax.f32 %v542, %v662
  %v687 = vmax.f32 %v543, %v663
  %v688 = vmax.f32 %v544, %v664
  %v689 = vmax.f32 %v545, %v665
  %v690 = vmax.f32 %v546, %v666
  %v691 = vmax.f32 %v547, %v667
  %v692 = vmax.f32 %v548, %v668
  %v693 = vmax.f32 %v549, %v669
  %v694 = vmax.f32 %v550, %v670
  %v695 = vmax.f32 %v551, %v671
  %v696 = vmax.f32 %v552, %v672
  %v697 = vmax.f32 %v553, %v673
  %v698 = vmax.f32 %v554, %v674
  %v699 = vmax.f32 %v555, %v675
  %v700 = vmax.f32 %v556, %v676
  %v701 = vmax.f32 %v557, %v677
  %v702 = vmax.f32 %v558, %v678
  %v703 = vmax.f32 %v559, %v679
  %728 = vrot.lane.b32.xlu0 %v152, 127
  %v729 = vpop.permute.xlu0 %728
  %730 = vrot.lane.b32.xlu0 %v153, 127
  %v731 = vpop.permute.xlu0 %730
  %732 = vrot.lane.b32.xlu0 %v154, 127
  %v733 = vpop.permute.xlu0 %732
  %734 = vrot.lane.b32.xlu0 %v155, 127
  %v735 = vpop.permute.xlu0 %734
  %736 = vrot.lane.b32.xlu0 %v156, 127
  %v737 = vpop.permute.xlu0 %736
  %738 = vrot.lane.b32.xlu0 %v157, 127
  %v739 = vpop.permute.xlu0 %738
  %740 = vrot.lane.b32.xlu0 %v158, 127
  %v741 = vpop.permute.xlu0 %740
  %742 = vrot.lane.b32.xlu0 %v159, 127
  %v743 = vpop.permute.xlu0 %742
  %744 = vrot.lane.b32.xlu0 %v160, 127
  %v745 = vpop.permute.xlu0 %744
  %746 = vrot.lane.b32.xlu0 %v161, 127
  %v747 = vpop.permute.xlu0 %746
  %748 = vrot.lane.b32.xlu0 %v162, 127
  %v749 = vpop.permute.xlu0 %748
  %750 = vrot.lane.b32.xlu0 %v163, 127
  %v751 = vpop.permute.xlu0 %750
  %752 = vrot.lane.b32.xlu0 %v164, 127
  %v753 = vpop.permute.xlu0 %752
  %754 = vrot.lane.b32.xlu0 %v165, 127
  %v755 = vpop.permute.xlu0 %754
  %756 = vrot.lane.b32.xlu0 %v166, 127
  %v757 = vpop.permute.xlu0 %756
  %758 = vrot.lane.b32.xlu0 %v167, 127
  %v759 = vpop.permute.xlu0 %758
  %760 = vrot.lane.b32.xlu0 %v168, 127
  %v761 = vpop.permute.xlu0 %760
  %762 = vrot.lane.b32.xlu0 %v169, 127
  %v763 = vpop.permute.xlu0 %762
  %764 = vrot.lane.b32.xlu0 %v170, 127
  %v765 = vpop.permute.xlu0 %764
  %766 = vrot.lane.b32.xlu0 %v171, 127
  %v767 = vpop.permute.xlu0 %766
  %768 = vrot.lane.b32.xlu0 %v172, 127
  %v769 = vpop.permute.xlu0 %768
  %770 = vrot.lane.b32.xlu0 %v173, 127
  %v771 = vpop.permute.xlu0 %770
  %772 = vrot.lane.b32.xlu0 %v174, 127
  %v773 = vpop.permute.xlu0 %772
  %774 = vrot.lane.b32.xlu0 %v175, 127
  %v775 = vpop.permute.xlu0 %774
  %v800 = vmin.f32 %v152, %v729
  %v801 = vmin.f32 %v153, %v731
  %v802 = vmin.f32 %v154, %v733
  %v803 = vmin.f32 %v155, %v735
  %v804 = vmin.f32 %v156, %v737
  %v805 = vmin.f32 %v157, %v739
  %v806 = vmin.f32 %v158, %v741
  %v807 = vmin.f32 %v159, %v743
  %v808 = vmin.f32 %v160, %v745
  %v809 = vmin.f32 %v161, %v747
  %v810 = vmin.f32 %v162, %v749
  %v811 = vmin.f32 %v163, %v751
  %v812 = vmin.f32 %v164, %v753
  %v813 = vmin.f32 %v165, %v755
  %v814 = vmin.f32 %v166, %v757
  %v815 = vmin.f32 %v167, %v759
  %v816 = vmin.f32 %v168, %v761
  %v817 = vmin.f32 %v169, %v763
  %v818 = vmin.f32 %v170, %v765
  %v819 = vmin.f32 %v171, %v767
  %v820 = vmin.f32 %v172, %v769
  %v821 = vmin.f32 %v173, %v771
  %v822 = vmin.f32 %v174, %v773
  %v823 = vmin.f32 %v175, %v775
  %824 = vrot.lane.b32.xlu0 %v152, 126
  %v825 = vpop.permute.xlu0 %824
  %826 = vrot.lane.b32.xlu0 %v153, 126
  %v827 = vpop.permute.xlu0 %826
  %828 = vrot.lane.b32.xlu0 %v154, 126
  %v829 = vpop.permute.xlu0 %828
  %830 = vrot.lane.b32.xlu0 %v155, 126
  %v831 = vpop.permute.xlu0 %830
  %832 = vrot.lane.b32.xlu0 %v156, 126
  %v833 = vpop.permute.xlu0 %832
  %834 = vrot.lane.b32.xlu0 %v157, 126
  %v835 = vpop.permute.xlu0 %834
  %836 = vrot.lane.b32.xlu0 %v158, 126
  %v837 = vpop.permute.xlu0 %836
  %838 = vrot.lane.b32.xlu0 %v159, 126
  %v839 = vpop.permute.xlu0 %838
  %840 = vrot.lane.b32.xlu0 %v160, 126
  %v841 = vpop.permute.xlu0 %840
  %842 = vrot.lane.b32.xlu0 %v161, 126
  %v843 = vpop.permute.xlu0 %842
  %844 = vrot.lane.b32.xlu0 %v162, 126
  %v845 = vpop.permute.xlu0 %844
  %846 = vrot.lane.b32.xlu0 %v163, 126
  %v847 = vpop.permute.xlu0 %846
  %848 = vrot.lane.b32.xlu0 %v164, 126
  %v849 = vpop.permute.xlu0 %848
  %850 = vrot.lane.b32.xlu0 %v165, 126
  %v851 = vpop.permute.xlu0 %850
  %852 = vrot.lane.b32.xlu0 %v166, 126
  %v853 = vpop.permute.xlu0 %852
  %854 = vrot.lane.b32.xlu0 %v167, 126
  %v855 = vpop.permute.xlu0 %854
  %856 = vrot.lane.b32.xlu0 %v168, 126
  %v857 = vpop.permute.xlu0 %856
  %858 = vrot.lane.b32.xlu0 %v169, 126
  %v859 = vpop.permute.xlu0 %858
  %860 = vrot.lane.b32.xlu0 %v170, 126
  %v861 = vpop.permute.xlu0 %860
  %862 = vrot.lane.b32.xlu0 %v171, 126
  %v863 = vpop.permute.xlu0 %862
  %864 = vrot.lane.b32.xlu0 %v172, 126
  %v865 = vpop.permute.xlu0 %864
  %866 = vrot.lane.b32.xlu0 %v173, 126
  %v867 = vpop.permute.xlu0 %866
  %868 = vrot.lane.b32.xlu0 %v174, 126
  %v869 = vpop.permute.xlu0 %868
  %870 = vrot.lane.b32.xlu0 %v175, 126
  %v871 = vpop.permute.xlu0 %870
  %v896 = vmin.f32 %v800, %v825
  %v897 = vmin.f32 %v801, %v827
  %v898 = vmin.f32 %v802, %v829
  %v899 = vmin.f32 %v803, %v831
  %v900 = vmin.f32 %v804, %v833
  %v901 = vmin.f32 %v805, %v835
  %v902 = vmin.f32 %v806, %v837
  %v903 = vmin.f32 %v807, %v839
  %v904 = vmin.f32 %v808, %v841
  %v905 = vmin.f32 %v809, %v843
  %v906 = vmin.f32 %v810, %v845
  %v907 = vmin.f32 %v811, %v847
  %v908 = vmin.f32 %v812, %v849
  %v909 = vmin.f32 %v813, %v851
  %v910 = vmin.f32 %v814, %v853
  %v911 = vmin.f32 %v815, %v855
  %v912 = vmin.f32 %v816, %v857
  %v913 = vmin.f32 %v817, %v859
  %v914 = vmin.f32 %v818, %v861
  %v915 = vmin.f32 %v819, %v863
  %v916 = vmin.f32 %v820, %v865
  %v917 = vmin.f32 %v821, %v867
  %v918 = vmin.f32 %v822, %v869
  %v919 = vmin.f32 %v823, %v871
  %v920 = vmin.f32 %v416, %v680
  %v921 = vmin.f32 %v417, %v681
  %v922 = vmin.f32 %v418, %v682
  %v923 = vmin.f32 %v419, %v683
  %v924 = vmin.f32 %v420, %v684
  %v925 = vmin.f32 %v421, %v685
  %v926 = vmin.f32 %v422, %v686
  %v927 = vmin.f32 %v423, %v687
  %v928 = vmin.f32 %v424, %v688
  %v929 = vmin.f32 %v425, %v689
  %v930 = vmin.f32 %v426, %v690
  %v931 = vmin.f32 %v427, %v691
  %v932 = vmin.f32 %v428, %v692
  %v933 = vmin.f32 %v429, %v693
  %v934 = vmin.f32 %v430, %v694
  %v935 = vmin.f32 %v431, %v695
  %v936 = vmin.f32 %v432, %v696
  %v937 = vmin.f32 %v433, %v697
  %v938 = vmin.f32 %v434, %v698
  %v939 = vmin.f32 %v435, %v699
  %v940 = vmin.f32 %v436, %v700
  %v941 = vmin.f32 %v437, %v701
  %v942 = vmin.f32 %v438, %v702
  %v943 = vmin.f32 %v439, %v703
  %v944 = vmax.f32 %v416, %v680
  %v945 = vmax.f32 %v417, %v681
  %v946 = vmax.f32 %v418, %v682
  %v947 = vmax.f32 %v419, %v683
  %v948 = vmax.f32 %v420, %v684
  %v949 = vmax.f32 %v421, %v685
  %v950 = vmax.f32 %v422, %v686
  %v951 = vmax.f32 %v423, %v687
  %v952 = vmax.f32 %v424, %v688
  %v953 = vmax.f32 %v425, %v689
  %v954 = vmax.f32 %v426, %v690
  %v955 = vmax.f32 %v427, %v691
  %v956 = vmax.f32 %v428, %v692
  %v957 = vmax.f32 %v429, %v693
  %v958 = vmax.f32 %v430, %v694
  %v959 = vmax.f32 %v431, %v695
  %v960 = vmax.f32 %v432, %v696
  %v961 = vmax.f32 %v433, %v697
  %v962 = vmax.f32 %v434, %v698
  %v963 = vmax.f32 %v435, %v699
  %v964 = vmax.f32 %v436, %v700
  %v965 = vmax.f32 %v437, %v701
  %v966 = vmax.f32 %v438, %v702
  %v967 = vmax.f32 %v439, %v703
  %v968 = vmin.f32 %v944, %v896
  %v969 = vmin.f32 %v945, %v897
  %v970 = vmin.f32 %v946, %v898
  %v971 = vmin.f32 %v947, %v899
  %v972 = vmin.f32 %v948, %v900
  %v973 = vmin.f32 %v949, %v901
  %v974 = vmin.f32 %v950, %v902
  %v975 = vmin.f32 %v951, %v903
  %v976 = vmin.f32 %v952, %v904
  %v977 = vmin.f32 %v953, %v905
  %v978 = vmin.f32 %v954, %v906
  %v979 = vmin.f32 %v955, %v907
  %v980 = vmin.f32 %v956, %v908
  %v981 = vmin.f32 %v957, %v909
  %v982 = vmin.f32 %v958, %v910
  %v983 = vmin.f32 %v959, %v911
  %v984 = vmin.f32 %v960, %v912
  %v985 = vmin.f32 %v961, %v913
  %v986 = vmin.f32 %v962, %v914
  %v987 = vmin.f32 %v963, %v915
  %v988 = vmin.f32 %v964, %v916
  %v989 = vmin.f32 %v965, %v917
  %v990 = vmin.f32 %v966, %v918
  %v991 = vmin.f32 %v967, %v919
  %v992 = vmax.f32 %v920, %v968
  %v993 = vmax.f32 %v921, %v969
  %v994 = vmax.f32 %v922, %v970
  %v995 = vmax.f32 %v923, %v971
  %v996 = vmax.f32 %v924, %v972
  %v997 = vmax.f32 %v925, %v973
  %v998 = vmax.f32 %v926, %v974
  %v999 = vmax.f32 %v927, %v975
  %v1000 = vmax.f32 %v928, %v976
  %v1001 = vmax.f32 %v929, %v977
  %v1002 = vmax.f32 %v930, %v978
  %v1003 = vmax.f32 %v931, %v979
  %v1004 = vmax.f32 %v932, %v980
  %v1005 = vmax.f32 %v933, %v981
  %v1006 = vmax.f32 %v934, %v982
  %v1007 = vmax.f32 %v935, %v983
  %v1008 = vmax.f32 %v936, %v984
  %v1009 = vmax.f32 %v937, %v985
  %v1010 = vmax.f32 %v938, %v986
  %v1011 = vmax.f32 %v939, %v987
  %v1012 = vmax.f32 %v940, %v988
  %v1013 = vmax.f32 %v941, %v989
  %v1014 = vmax.f32 %v942, %v990
  %v1015 = vmax.f32 %v943, %v991
  %1040 = vrot.lane.b32.xlu0 %v992, 1
  %v1041 = vpop.permute.xlu0 %1040
  %1042 = vrot.lane.b32.xlu0 %v993, 1
  %v1043 = vpop.permute.xlu0 %1042
  %1044 = vrot.lane.b32.xlu0 %v994, 1
  %v1045 = vpop.permute.xlu0 %1044
  %1046 = vrot.lane.b32.xlu0 %v995, 1
  %v1047 = vpop.permute.xlu0 %1046
  %1048 = vrot.lane.b32.xlu0 %v996, 1
  %v1049 = vpop.permute.xlu0 %1048
  %1050 = vrot.lane.b32.xlu0 %v997, 1
  %v1051 = vpop.permute.xlu0 %1050
  %1052 = vrot.lane.b32.xlu0 %v998, 1
  %v1053 = vpop.permute.xlu0 %1052
  %1054 = vrot.lane.b32.xlu0 %v999, 1
  %v1055 = vpop.permute.xlu0 %1054
  %1056 = vrot.lane.b32.xlu0 %v1000, 1
  %v1057 = vpop.permute.xlu0 %1056
  %1058 = vrot.lane.b32.xlu0 %v1001, 1
  %v1059 = vpop.permute.xlu0 %1058
  %1060 = vrot.lane.b32.xlu0 %v1002, 1
  %v1061 = vpop.permute.xlu0 %1060
  %1062 = vrot.lane.b32.xlu0 %v1003, 1
  %v1063 = vpop.permute.xlu0 %1062
  %1064 = vrot.lane.b32.xlu0 %v1004, 1
  %v1065 = vpop.permute.xlu0 %1064
  %1066 = vrot.lane.b32.xlu0 %v1005, 1
  %v1067 = vpop.permute.xlu0 %1066
  %1068 = vrot.lane.b32.xlu0 %v1006, 1
  %v1069 = vpop.permute.xlu0 %1068
  %1070 = vrot.lane.b32.xlu0 %v1007, 1
  %v1071 = vpop.permute.xlu0 %1070
  %1072 = vrot.lane.b32.xlu0 %v1008, 1
  %v1073 = vpop.permute.xlu0 %1072
  %1074 = vrot.lane.b32.xlu0 %v1009, 1
  %v1075 = vpop.permute.xlu0 %1074
  %1076 = vrot.lane.b32.xlu0 %v1010, 1
  %v1077 = vpop.permute.xlu0 %1076
  %1078 = vrot.lane.b32.xlu0 %v1011, 1
  %v1079 = vpop.permute.xlu0 %1078
  %1080 = vrot.lane.b32.xlu0 %v1012, 1
  %v1081 = vpop.permute.xlu0 %1080
  %1082 = vrot.lane.b32.xlu0 %v1013, 1
  %v1083 = vpop.permute.xlu0 %1082
  %1084 = vrot.lane.b32.xlu0 %v1014, 1
  %v1085 = vpop.permute.xlu0 %1084
  %1086 = vrot.lane.b32.xlu0 %v1015, 1
  %v1087 = vpop.permute.xlu0 %1086
  %v1112 = vsub.f32 %v32, %v1041
  %v1113 = vsub.f32 %v33, %v1043
  %v1114 = vsub.f32 %v34, %v1045
  %v1115 = vsub.f32 %v35, %v1047
  %v1116 = vsub.f32 %v36, %v1049
  %v1117 = vsub.f32 %v37, %v1051
  %v1118 = vsub.f32 %v38, %v1053
  %v1119 = vsub.f32 %v39, %v1055
  %v1120 = vsub.f32 %v40, %v1057
  %v1121 = vsub.f32 %v41, %v1059
  %v1122 = vsub.f32 %v42, %v1061
  %v1123 = vsub.f32 %v43, %v1063
  %v1124 = vsub.f32 %v44, %v1065
  %v1125 = vsub.f32 %v45, %v1067
  %v1126 = vsub.f32 %v46, %v1069
  %v1127 = vsub.f32 %v47, %v1071
  %v1128 = vsub.f32 %v48, %v1073
  %v1129 = vsub.f32 %v49, %v1075
  %v1130 = vsub.f32 %v50, %v1077
  %v1131 = vsub.f32 %v51, %v1079
  %v1132 = vsub.f32 %v52, %v1081
  %v1133 = vsub.f32 %v53, %v1083
  %v1134 = vsub.f32 %v54, %v1085
  %v1135 = vsub.f32 %v55, %v1087
  %1160 = vrot.lane.b32.xlu0 %v1112, 127
  %v1161 = vpop.permute.xlu0 %1160
  %1162 = vrot.lane.b32.xlu0 %v1113, 127
  %v1163 = vpop.permute.xlu0 %1162
  %1164 = vrot.lane.b32.xlu0 %v1114, 127
  %v1165 = vpop.permute.xlu0 %1164
  %1166 = vrot.lane.b32.xlu0 %v1115, 127
  %v1167 = vpop.permute.xlu0 %1166
  %1168 = vrot.lane.b32.xlu0 %v1116, 127
  %v1169 = vpop.permute.xlu0 %1168
  %1170 = vrot.lane.b32.xlu0 %v1117, 127
  %v1171 = vpop.permute.xlu0 %1170
  %1172 = vrot.lane.b32.xlu0 %v1118, 127
  %v1173 = vpop.permute.xlu0 %1172
  %1174 = vrot.lane.b32.xlu0 %v1119, 127
  %v1175 = vpop.permute.xlu0 %1174
  %1176 = vrot.lane.b32.xlu0 %v1120, 127
  %v1177 = vpop.permute.xlu0 %1176
  %1178 = vrot.lane.b32.xlu0 %v1121, 127
  %v1179 = vpop.permute.xlu0 %1178
  %1180 = vrot.lane.b32.xlu0 %v1122, 127
  %v1181 = vpop.permute.xlu0 %1180
  %1182 = vrot.lane.b32.xlu0 %v1123, 127
  %v1183 = vpop.permute.xlu0 %1182
  %1184 = vrot.lane.b32.xlu0 %v1124, 127
  %v1185 = vpop.permute.xlu0 %1184
  %1186 = vrot.lane.b32.xlu0 %v1125, 127
  %v1187 = vpop.permute.xlu0 %1186
  %1188 = vrot.lane.b32.xlu0 %v1126, 127
  %v1189 = vpop.permute.xlu0 %1188
  %1190 = vrot.lane.b32.xlu0 %v1127, 127
  %v1191 = vpop.permute.xlu0 %1190
  %1192 = vrot.lane.b32.xlu0 %v1128, 127
  %v1193 = vpop.permute.xlu0 %1192
  %1194 = vrot.lane.b32.xlu0 %v1129, 127
  %v1195 = vpop.permute.xlu0 %1194
  %1196 = vrot.lane.b32.xlu0 %v1130, 127
  %v1197 = vpop.permute.xlu0 %1196
  %1198 = vrot.lane.b32.xlu0 %v1131, 127
  %v1199 = vpop.permute.xlu0 %1198
  %1200 = vrot.lane.b32.xlu0 %v1132, 127
  %v1201 = vpop.permute.xlu0 %1200
  %1202 = vrot.lane.b32.xlu0 %v1133, 127
  %v1203 = vpop.permute.xlu0 %1202
  %1204 = vrot.lane.b32.xlu0 %v1134, 127
  %v1205 = vpop.permute.xlu0 %1204
  %1206 = vrot.lane.b32.xlu0 %v1135, 127
  %v1207 = vpop.permute.xlu0 %1206
  %vm1232 = vcmask 261120
  %1233 = vst.msk [vmem:[%s1] sm:$0xff] %vm1232, %v1161
  %1234 = vst.msk [vmem:[%s1 + $0x8] sm:$0xff] %vm1232, %v1163
  %1235 = vst.msk [vmem:[%s1 + $0x10] sm:$0xff] %vm1232, %v1165
  %1236 = vst.msk [vmem:[%s1 + $0x18] sm:$0xff] %vm1232, %v1167
  %1237 = vst.msk [vmem:[%s1 + $0x20] sm:$0xff] %vm1232, %v1169
  %1238 = vst.msk [vmem:[%s1 + $0x28] sm:$0xff] %vm1232, %v1171
  %1239 = vst.msk [vmem:[%s1 + $0x30] sm:$0xff] %vm1232, %v1173
  %1240 = vst.msk [vmem:[%s1 + $0x38] sm:$0xff] %vm1232, %v1175
  %1241 = vst.msk [vmem:[%s1 + $0x40] sm:$0xff] %vm1232, %v1177
  %1242 = vst.msk [vmem:[%s1 + $0x48] sm:$0xff] %vm1232, %v1179
  %1243 = vst.msk [vmem:[%s1 + $0x50] sm:$0xff] %vm1232, %v1181
  %1244 = vst.msk [vmem:[%s1 + $0x58] sm:$0xff] %vm1232, %v1183
  %1245 = vst.msk [vmem:[%s1 + $0x60] sm:$0xff] %vm1232, %v1185
  %1246 = vst.msk [vmem:[%s1 + $0x68] sm:$0xff] %vm1232, %v1187
  %1247 = vst.msk [vmem:[%s1 + $0x70] sm:$0xff] %vm1232, %v1189
  %1248 = vst.msk [vmem:[%s1 + $0x78] sm:$0xff] %vm1232, %v1191
  %1249 = vst.msk [vmem:[%s1 + $0x80] sm:$0xff] %vm1232, %v1193
  %1250 = vst.msk [vmem:[%s1 + $0x88] sm:$0xff] %vm1232, %v1195
  %1251 = vst.msk [vmem:[%s1 + $0x90] sm:$0xff] %vm1232, %v1197
  %1252 = vst.msk [vmem:[%s1 + $0x98] sm:$0xff] %vm1232, %v1199
  %1253 = vst.msk [vmem:[%s1 + $0xa0] sm:$0xff] %vm1232, %v1201
  %1254 = vst.msk [vmem:[%s1 + $0xa8] sm:$0xff] %vm1232, %v1203
  %1255 = vst.msk [vmem:[%s1 + $0xb0] sm:$0xff] %vm1232, %v1205
  %1256 = vst.msk [vmem:[%s1 + $0xb8] sm:$0xff] %vm1232, %v1207
  // Predicated region
  $region6: #{pula_iterator_forward.2} parent=0 // pred_check
    _
  $region7: #{pula_iterator_forward.2} parent=0 // pred_check_branch
    %1258 = sbr.rel (0) target = $region9
  $region8: #{pula_iterator_forward.2} parent=0 // pred_region
    _
  $region9: #{pula_iterator_forward.2} parent=0 // pred_fallthru
    _
  // Predicated region
  $region10: #{pula_iterator_forward.2} parent=0 // pred_check
    _
  $region11: #{pula_iterator_forward.2} parent=0 // pred_check_branch
    %1260 = sbr.rel (0) target = $region13
  $region12: #{pula_iterator_forward.2} parent=0 // pred_region
    _
  $region13: #{pula_iterator_forward.2} parent=0 // pred_fallthru
    _

// kernel: pula_iterator_forward.3
$region0: #{pula_iterator_forward.3}
  #allocation0 [shape = 'u32[]', space=smem, size = 0x4, offset = 0x4, fixed_abs, tag = 'smem constant byte address 0x4 - core index']
  #allocation1 [shape = 'u32[144,128]{1,0:T(1,128)}', space=vmem, size = 0x12000, scoped, tag = 'internal scratch']
  %s0 = inlined_call_operand.vmem [shape: f32[4,192,34], index: 0, kind: input, shape index: {}]
  %s1 = inlined_call_operand.vmem [shape: f32[4,192,34], index: 1, kind: input, shape index: {}]
  %s2 = inlined_call_operand.vmem [shape: f32[192,34], index: 2, kind: output, shape index: {}]
  %s3 = sld [smem:[#allocation0]]
  $region18: #{pula_iterator_forward.3} parent=0
    _
  %s5 = ssub.s32 1, %s3
  %s6 = scalar_select 0, %s5, %s3
  // Predicated region
  $region2: #{pula_iterator_forward.3} parent=0 // pred_check
    _
  $region3: #{pula_iterator_forward.3} parent=0 // pred_check_branch
    %8 = sbr.rel (0) target = $region5
  $region4: #{pula_iterator_forward.3} parent=0 // pred_region
    _
  $region5: #{pula_iterator_forward.3} parent=0 // pred_fallthru
    _
  // Predicated region
  $region6: #{pula_iterator_forward.3} parent=0 // pred_check
    _
  $region7: #{pula_iterator_forward.3} parent=0 // pred_check_branch
    %10 = sbr.rel (0) target = $region9
  $region8: #{pula_iterator_forward.3} parent=0 // pred_region
    _
  $region9: #{pula_iterator_forward.3} parent=0 // pred_fallthru
    _
  %s11 = scalar_lea.vmem %s1, 192
  %v12 = vld [vmem:[%s11] sm:$0xff]
  %v13 = vld [vmem:[%s11 + $0x8] sm:$0xff]
  %v14 = vld [vmem:[%s11 + $0x10] sm:$0xff]
  %v15 = vld [vmem:[%s11 + $0x18] sm:$0xff]
  %v16 = vld [vmem:[%s11 + $0x20] sm:$0xff]
  %v17 = vld [vmem:[%s11 + $0x28] sm:$0xff]
  %v18 = vld [vmem:[%s11 + $0x30] sm:$0xff]
  %v19 = vld [vmem:[%s11 + $0x38] sm:$0xff]
  %v20 = vld [vmem:[%s11 + $0x40] sm:$0xff]
  %v21 = vld [vmem:[%s11 + $0x48] sm:$0xff]
  %v22 = vld [vmem:[%s11 + $0x50] sm:$0xff]
  %v23 = vld [vmem:[%s11 + $0x58] sm:$0xff]
  %v24 = vld [vmem:[%s11 + $0x60] sm:$0xff]
  %v25 = vld [vmem:[%s11 + $0x68] sm:$0xff]
  %v26 = vld [vmem:[%s11 + $0x70] sm:$0xff]
  %v27 = vld [vmem:[%s11 + $0x78] sm:$0xff]
  %v28 = vld [vmem:[%s11 + $0x80] sm:$0xff]
  %v29 = vld [vmem:[%s11 + $0x88] sm:$0xff]
  %v30 = vld [vmem:[%s11 + $0x90] sm:$0xff]
  %v31 = vld [vmem:[%s11 + $0x98] sm:$0xff]
  %v32 = vld [vmem:[%s11 + $0xa0] sm:$0xff]
  %v33 = vld [vmem:[%s11 + $0xa8] sm:$0xff]
  %v34 = vld [vmem:[%s11 + $0xb0] sm:$0xff]
  %v35 = vld [vmem:[%s11 + $0xb8] sm:$0xff]
  %s36 = scalar_lea.vmem %s0, 192
  %v37 = vld [vmem:[%s36] sm:$0xff]
  %v38 = vld [vmem:[%s36 + $0x8] sm:$0xff]
  %v39 = vld [vmem:[%s36 + $0x10] sm:$0xff]
  %v40 = vld [vmem:[%s36 + $0x18] sm:$0xff]
  %v41 = vld [vmem:[%s36 + $0x20] sm:$0xff]
  %v42 = vld [vmem:[%s36 + $0x28] sm:$0xff]
  %v43 = vld [vmem:[%s36 + $0x30] sm:$0xff]
  %v44 = vld [vmem:[%s36 + $0x38] sm:$0xff]
  %v45 = vld [vmem:[%s36 + $0x40] sm:$0xff]
  %v46 = vld [vmem:[%s36 + $0x48] sm:$0xff]
  %v47 = vld [vmem:[%s36 + $0x50] sm:$0xff]
  %v48 = vld [vmem:[%s36 + $0x58] sm:$0xff]
  %v49 = vld [vmem:[%s36 + $0x60] sm:$0xff]
  %v50 = vld [vmem:[%s36 + $0x68] sm:$0xff]
  %v51 = vld [vmem:[%s36 + $0x70] sm:$0xff]
  %v52 = vld [vmem:[%s36 + $0x78] sm:$0xff]
  %v53 = vld [vmem:[%s36 + $0x80] sm:$0xff]
  %v54 = vld [vmem:[%s36 + $0x88] sm:$0xff]
  %v55 = vld [vmem:[%s36 + $0x90] sm:$0xff]
  %v56 = vld [vmem:[%s36 + $0x98] sm:$0xff]
  %v57 = vld [vmem:[%s36 + $0xa0] sm:$0xff]
  %v58 = vld [vmem:[%s36 + $0xa8] sm:$0xff]
  %v59 = vld [vmem:[%s36 + $0xb0] sm:$0xff]
  %v60 = vld [vmem:[%s36 + $0xb8] sm:$0xff]
  %v61 = vmul.f32 %v12, %v37
  %v62 = vmul.f32 %v13, %v38
  %v63 = vmul.f32 %v14, %v39
  %v64 = vmul.f32 %v15, %v40
  %v65 = vmul.f32 %v16, %v41
  %v66 = vmul.f32 %v17, %v42
  %v67 = vmul.f32 %v18, %v43
  %v68 = vmul.f32 %v19, %v44
  %v69 = vmul.f32 %v20, %v45
  %v70 = vmul.f32 %v21, %v46
  %v71 = vmul.f32 %v22, %v47
  %v72 = vmul.f32 %v23, %v48
  %v73 = vmul.f32 %v24, %v49
  %v74 = vmul.f32 %v25, %v50
  %v75 = vmul.f32 %v26, %v51
  %v76 = vmul.f32 %v27, %v52
  %v77 = vmul.f32 %v28, %v53
  %v78 = vmul.f32 %v29, %v54
  %v79 = vmul.f32 %v30, %v55
  %v80 = vmul.f32 %v31, %v56
  %v81 = vmul.f32 %v32, %v57
  %v82 = vmul.f32 %v33, %v58
  %v83 = vmul.f32 %v34, %v59
  %v84 = vmul.f32 %v35, %v60
  %v85 = vld [vmem:[%s1] sm:$0xff]
  %v86 = vld [vmem:[%s1 + $0x8] sm:$0xff]
  %v87 = vld [vmem:[%s1 + $0x10] sm:$0xff]
  %v88 = vld [vmem:[%s1 + $0x18] sm:$0xff]
  %v89 = vld [vmem:[%s1 + $0x20] sm:$0xff]
  %v90 = vld [vmem:[%s1 + $0x28] sm:$0xff]
  %v91 = vld [vmem:[%s1 + $0x30] sm:$0xff]
  %v92 = vld [vmem:[%s1 + $0x38] sm:$0xff]
  %v93 = vld [vmem:[%s1 + $0x40] sm:$0xff]
  %v94 = vld [vmem:[%s1 + $0x48] sm:$0xff]
  %v95 = vld [vmem:[%s1 + $0x50] sm:$0xff]
  %v96 = vld [vmem:[%s1 + $0x58] sm:$0xff]
  %v97 = vld [vmem:[%s1 + $0x60] sm:$0xff]
  %v98 = vld [vmem:[%s1 + $0x68] sm:$0xff]
  %v99 = vld [vmem:[%s1 + $0x70] sm:$0xff]
  %v100 = vld [vmem:[%s1 + $0x78] sm:$0xff]
  %v101 = vld [vmem:[%s1 + $0x80] sm:$0xff]
  %v102 = vld [vmem:[%s1 + $0x88] sm:$0xff]
  %v103 = vld [vmem:[%s1 + $0x90] sm:$0xff]
  %v104 = vld [vmem:[%s1 + $0x98] sm:$0xff]
  %v105 = vld [vmem:[%s1 + $0xa0] sm:$0xff]
  %v106 = vld [vmem:[%s1 + $0xa8] sm:$0xff]
  %v107 = vld [vmem:[%s1 + $0xb0] sm:$0xff]
  %v108 = vld [vmem:[%s1 + $0xb8] sm:$0xff]
  %v109 = vld [vmem:[%s0] sm:$0xff]
  %v110 = vld [vmem:[%s0 + $0x8] sm:$0xff]
  %v111 = vld [vmem:[%s0 + $0x10] sm:$0xff]
  %v112 = vld [vmem:[%s0 + $0x18] sm:$0xff]
  %v113 = vld [vmem:[%s0 + $0x20] sm:$0xff]
  %v114 = vld [vmem:[%s0 + $0x28] sm:$0xff]
  %v115 = vld [vmem:[%s0 + $0x30] sm:$0xff]
  %v116 = vld [vmem:[%s0 + $0x38] sm:$0xff]
  %v117 = vld [vmem:[%s0 + $0x40] sm:$0xff]
  %v118 = vld [vmem:[%s0 + $0x48] sm:$0xff]
  %v119 = vld [vmem:[%s0 + $0x50] sm:$0xff]
  %v120 = vld [vmem:[%s0 + $0x58] sm:$0xff]
  %v121 = vld [vmem:[%s0 + $0x60] sm:$0xff]
  %v122 = vld [vmem:[%s0 + $0x68] sm:$0xff]
  %v123 = vld [vmem:[%s0 + $0x70] sm:$0xff]
  %v124 = vld [vmem:[%s0 + $0x78] sm:$0xff]
  %v125 = vld [vmem:[%s0 + $0x80] sm:$0xff]
  %v126 = vld [vmem:[%s0 + $0x88] sm:$0xff]
  %v127 = vld [vmem:[%s0 + $0x90] sm:$0xff]
  %v128 = vld [vmem:[%s0 + $0x98] sm:$0xff]
  %v129 = vld [vmem:[%s0 + $0xa0] sm:$0xff]
  %v130 = vld [vmem:[%s0 + $0xa8] sm:$0xff]
  %v131 = vld [vmem:[%s0 + $0xb0] sm:$0xff]
  %v132 = vld [vmem:[%s0 + $0xb8] sm:$0xff]
  %v133 = vmul.f32 %v85, %v109
  %v134 = vmul.f32 %v86, %v110
  %v135 = vmul.f32 %v87, %v111
  %v136 = vmul.f32 %v88, %v112
  %v137 = vmul.f32 %v89, %v113
  %v138 = vmul.f32 %v90, %v114
  %v139 = vmul.f32 %v91, %v115
  %v140 = vmul.f32 %v92, %v116
  %v141 = vmul.f32 %v93, %v117
  %v142 = vmul.f32 %v94, %v118
  %v143 = vmul.f32 %v95, %v119
  %v144 = vmul.f32 %v96, %v120
  %v145 = vmul.f32 %v97, %v121
  %v146 = vmul.f32 %v98, %v122
  %v147 = vmul.f32 %v99, %v123
  %v148 = vmul.f32 %v100, %v124
  %v149 = vmul.f32 %v101, %v125
  %v150 = vmul.f32 %v102, %v126
  %v151 = vmul.f32 %v103, %v127
  %v152 = vmul.f32 %v104, %v128
  %v153 = vmul.f32 %v105, %v129
  %v154 = vmul.f32 %v106, %v130
  %v155 = vmul.f32 %v107, %v131
  %v156 = vmul.f32 %v108, %v132
  %v157 = vsub.f32 %v61, %v133
  %v158 = vsub.f32 %v62, %v134
  %v159 = vsub.f32 %v63, %v135
  %v160 = vsub.f32 %v64, %v136
  %v161 = vsub.f32 %v65, %v137
  %v162 = vsub.f32 %v66, %v138
  %v163 = vsub.f32 %v67, %v139
  %v164 = vsub.f32 %v68, %v140
  %v165 = vsub.f32 %v69, %v141
  %v166 = vsub.f32 %v70, %v142
  %v167 = vsub.f32 %v71, %v143
  %v168 = vsub.f32 %v72, %v144
  %v169 = vsub.f32 %v73, %v145
  %v170 = vsub.f32 %v74, %v146
  %v171 = vsub.f32 %v75, %v147
  %v172 = vsub.f32 %v76, %v148
  %v173 = vsub.f32 %v77, %v149
  %v174 = vsub.f32 %v78, %v150
  %v175 = vsub.f32 %v79, %v151
  %v176 = vsub.f32 %v80, %v152
  %v177 = vsub.f32 %v81, %v153
  %v178 = vsub.f32 %v82, %v154
  %v179 = vsub.f32 %v83, %v155
  %v180 = vsub.f32 %v84, %v156
  %s181 = scalar_lea.vmem %s1, 384
  %v182 = vld [vmem:[%s181] sm:$0xff]
  %v183 = vld [vmem:[%s181 + $0x8] sm:$0xff]
  %v184 = vld [vmem:[%s181 + $0x10] sm:$0xff]
  %v185 = vld [vmem:[%s181 + $0x18] sm:$0xff]
  %v186 = vld [vmem:[%s181 + $0x20] sm:$0xff]
  %v187 = vld [vmem:[%s181 + $0x28] sm:$0xff]
  %v188 = vld [vmem:[%s181 + $0x30] sm:$0xff]
  %v189 = vld [vmem:[%s181 + $0x38] sm:$0xff]
  %v190 = vld [vmem:[%s181 + $0x40] sm:$0xff]
  %v191 = vld [vmem:[%s181 + $0x48] sm:$0xff]
  %v192 = vld [vmem:[%s181 + $0x50] sm:$0xff]
  %v193 = vld [vmem:[%s181 + $0x58] sm:$0xff]
  %v194 = vld [vmem:[%s181 + $0x60] sm:$0xff]
  %v195 = vld [vmem:[%s181 + $0x68] sm:$0xff]
  %v196 = vld [vmem:[%s181 + $0x70] sm:$0xff]
  %v197 = vld [vmem:[%s181 + $0x78] sm:$0xff]
  %v198 = vld [vmem:[%s181 + $0x80] sm:$0xff]
  %v199 = vld [vmem:[%s181 + $0x88] sm:$0xff]
  %v200 = vld [vmem:[%s181 + $0x90] sm:$0xff]
  %v201 = vld [vmem:[%s181 + $0x98] sm:$0xff]
  %v202 = vld [vmem:[%s181 + $0xa0] sm:$0xff]
  %v203 = vld [vmem:[%s181 + $0xa8] sm:$0xff]
  %v204 = vld [vmem:[%s181 + $0xb0] sm:$0xff]
  %v205 = vld [vmem:[%s181 + $0xb8] sm:$0xff]
  %s206 = scalar_lea.vmem %s0, 384
  %v207 = vld [vmem:[%s206] sm:$0xff]
  %v208 = vld [vmem:[%s206 + $0x8] sm:$0xff]
  %v209 = vld [vmem:[%s206 + $0x10] sm:$0xff]
  %v210 = vld [vmem:[%s206 + $0x18] sm:$0xff]
  %v211 = vld [vmem:[%s206 + $0x20] sm:$0xff]
  %v212 = vld [vmem:[%s206 + $0x28] sm:$0xff]
  %v213 = vld [vmem:[%s206 + $0x30] sm:$0xff]
  %v214 = vld [vmem:[%s206 + $0x38] sm:$0xff]
  %v215 = vld [vmem:[%s206 + $0x40] sm:$0xff]
  %v216 = vld [vmem:[%s206 + $0x48] sm:$0xff]
  %v217 = vld [vmem:[%s206 + $0x50] sm:$0xff]
  %v218 = vld [vmem:[%s206 + $0x58] sm:$0xff]
  %v219 = vld [vmem:[%s206 + $0x60] sm:$0xff]
  %v220 = vld [vmem:[%s206 + $0x68] sm:$0xff]
  %v221 = vld [vmem:[%s206 + $0x70] sm:$0xff]
  %v222 = vld [vmem:[%s206 + $0x78] sm:$0xff]
  %v223 = vld [vmem:[%s206 + $0x80] sm:$0xff]
  %v224 = vld [vmem:[%s206 + $0x88] sm:$0xff]
  %v225 = vld [vmem:[%s206 + $0x90] sm:$0xff]
  %v226 = vld [vmem:[%s206 + $0x98] sm:$0xff]
  %v227 = vld [vmem:[%s206 + $0xa0] sm:$0xff]
  %v228 = vld [vmem:[%s206 + $0xa8] sm:$0xff]
  %v229 = vld [vmem:[%s206 + $0xb0] sm:$0xff]
  %v230 = vld [vmem:[%s206 + $0xb8] sm:$0xff]
  %v231 = vmul.f32 %v182, %v207
  %v232 = vmul.f32 %v183, %v208
  %v233 = vmul.f32 %v184, %v209
  %v234 = vmul.f32 %v185, %v210
  %v235 = vmul.f32 %v186, %v211
  %v236 = vmul.f32 %v187, %v212
  %v237 = vmul.f32 %v188, %v213
  %v238 = vmul.f32 %v189, %v214
  %v239 = vmul.f32 %v190, %v215
  %v240 = vmul.f32 %v191, %v216
  %v241 = vmul.f32 %v192, %v217
  %v242 = vmul.f32 %v193, %v218
  %v243 = vmul.f32 %v194, %v219
  %v244 = vmul.f32 %v195, %v220
  %v245 = vmul.f32 %v196, %v221
  %v246 = vmul.f32 %v197, %v222
  %v247 = vmul.f32 %v198, %v223
  %v248 = vmul.f32 %v199, %v224
  %v249 = vmul.f32 %v200, %v225
  %v250 = vmul.f32 %v201, %v226
  %v251 = vmul.f32 %v202, %v227
  %v252 = vmul.f32 %v203, %v228
  %v253 = vmul.f32 %v204, %v229
  %v254 = vmul.f32 %v205, %v230
  %v255 = vsub.f32 %v157, %v231
  %v256 = vsub.f32 %v158, %v232
  %v257 = vsub.f32 %v159, %v233
  %v258 = vsub.f32 %v160, %v234
  %v259 = vsub.f32 %v161, %v235
  %v260 = vsub.f32 %v162, %v236
  %v261 = vsub.f32 %v163, %v237
  %v262 = vsub.f32 %v164, %v238
  %v263 = vsub.f32 %v165, %v239
  %v264 = vsub.f32 %v166, %v240
  %v265 = vsub.f32 %v167, %v241
  %v266 = vsub.f32 %v168, %v242
  %v267 = vsub.f32 %v169, %v243
  %v268 = vsub.f32 %v170, %v244
  %v269 = vsub.f32 %v171, %v245
  %v270 = vsub.f32 %v172, %v246
  %v271 = vsub.f32 %v173, %v247
  %v272 = vsub.f32 %v174, %v248
  %v273 = vsub.f32 %v175, %v249
  %v274 = vsub.f32 %v176, %v250
  %v275 = vsub.f32 %v177, %v251
  %v276 = vsub.f32 %v178, %v252
  %v277 = vsub.f32 %v179, %v253
  %v278 = vsub.f32 %v180, %v254
  %s279 = scalar_lea.vmem %s1, 576
  %v280 = vld [vmem:[%s279] sm:$0xff]
  %v281 = vld [vmem:[%s279 + $0x8] sm:$0xff]
  %v282 = vld [vmem:[%s279 + $0x10] sm:$0xff]
  %v283 = vld [vmem:[%s279 + $0x18] sm:$0xff]
  %v284 = vld [vmem:[%s279 + $0x20] sm:$0xff]
  %v285 = vld [vmem:[%s279 + $0x28] sm:$0xff]
  %v286 = vld [vmem:[%s279 + $0x30] sm:$0xff]
  %v287 = vld [vmem:[%s279 + $0x38] sm:$0xff]
  %v288 = vld [vmem:[%s279 + $0x40] sm:$0xff]
  %v289 = vld [vmem:[%s279 + $0x48] sm:$0xff]
  %v290 = vld [vmem:[%s279 + $0x50] sm:$0xff]
  %v291 = vld [vmem:[%s279 + $0x58] sm:$0xff]
  %v292 = vld [vmem:[%s279 + $0x60] sm:$0xff]
  %v293 = vld [vmem:[%s279 + $0x68] sm:$0xff]
  %v294 = vld [vmem:[%s279 + $0x70] sm:$0xff]
  %v295 = vld [vmem:[%s279 + $0x78] sm:$0xff]
  %v296 = vld [vmem:[%s279 + $0x80] sm:$0xff]
  %v297 = vld [vmem:[%s279 + $0x88] sm:$0xff]
  %v298 = vld [vmem:[%s279 + $0x90] sm:$0xff]
  %v299 = vld [vmem:[%s279 + $0x98] sm:$0xff]
  %v300 = vld [vmem:[%s279 + $0xa0] sm:$0xff]
  %v301 = vld [vmem:[%s279 + $0xa8] sm:$0xff]
  %v302 = vld [vmem:[%s279 + $0xb0] sm:$0xff]
  %v303 = vld [vmem:[%s279 + $0xb8] sm:$0xff]
  %s304 = scalar_lea.vmem %s0, 576
  %v305 = vld [vmem:[%s304] sm:$0xff]
  %v306 = vld [vmem:[%s304 + $0x8] sm:$0xff]
  %v307 = vld [vmem:[%s304 + $0x10] sm:$0xff]
  %v308 = vld [vmem:[%s304 + $0x18] sm:$0xff]
  %v309 = vld [vmem:[%s304 + $0x20] sm:$0xff]
  %v310 = vld [vmem:[%s304 + $0x28] sm:$0xff]
  %v311 = vld [vmem:[%s304 + $0x30] sm:$0xff]
  %v312 = vld [vmem:[%s304 + $0x38] sm:$0xff]
  %v313 = vld [vmem:[%s304 + $0x40] sm:$0xff]
  %v314 = vld [vmem:[%s304 + $0x48] sm:$0xff]
  %v315 = vld [vmem:[%s304 + $0x50] sm:$0xff]
  %v316 = vld [vmem:[%s304 + $0x58] sm:$0xff]
  %v317 = vld [vmem:[%s304 + $0x60] sm:$0xff]
  %v318 = vld [vmem:[%s304 + $0x68] sm:$0xff]
  %v319 = vld [vmem:[%s304 + $0x70] sm:$0xff]
  %v320 = vld [vmem:[%s304 + $0x78] sm:$0xff]
  %v321 = vld [vmem:[%s304 + $0x80] sm:$0xff]
  %v322 = vld [vmem:[%s304 + $0x88] sm:$0xff]
  %v323 = vld [vmem:[%s304 + $0x90] sm:$0xff]
  %v324 = vld [vmem:[%s304 + $0x98] sm:$0xff]
  %v325 = vld [vmem:[%s304 + $0xa0] sm:$0xff]
  %v326 = vld [vmem:[%s304 + $0xa8] sm:$0xff]
  %v327 = vld [vmem:[%s304 + $0xb0] sm:$0xff]
  %v328 = vld [vmem:[%s304 + $0xb8] sm:$0xff]
  %v329 = vmul.f32 %v280, %v305
  %v330 = vmul.f32 %v281, %v306
  %v331 = vmul.f32 %v282, %v307
  %v332 = vmul.f32 %v283, %v308
  %v333 = vmul.f32 %v284, %v309
  %v334 = vmul.f32 %v285, %v310
  %v335 = vmul.f32 %v286, %v311
  %v336 = vmul.f32 %v287, %v312
  %v337 = vmul.f32 %v288, %v313
  %v338 = vmul.f32 %v289, %v314
  %v339 = vmul.f32 %v290, %v315
  %v340 = vmul.f32 %v291, %v316
  %v341 = vmul.f32 %v292, %v317
  %v342 = vmul.f32 %v293, %v318
  %v343 = vmul.f32 %v294, %v319
  %v344 = vmul.f32 %v295, %v320
  %v345 = vmul.f32 %v296, %v321
  %v346 = vmul.f32 %v297, %v322
  %v347 = vmul.f32 %v298, %v323
  %v348 = vmul.f32 %v299, %v324
  %v349 = vmul.f32 %v300, %v325
  %v350 = vmul.f32 %v301, %v326
  %v351 = vmul.f32 %v302, %v327
  %v352 = vmul.f32 %v303, %v328
  %v353 = vadd.f32 %v255, %v329
  %v354 = vadd.f32 %v256, %v330
  %v355 = vadd.f32 %v257, %v331
  %v356 = vadd.f32 %v258, %v332
  %v357 = vadd.f32 %v259, %v333
  %v358 = vadd.f32 %v260, %v334
  %v359 = vadd.f32 %v261, %v335
  %v360 = vadd.f32 %v262, %v336
  %v361 = vadd.f32 %v263, %v337
  %v362 = vadd.f32 %v264, %v338
  %v363 = vadd.f32 %v265, %v339
  %v364 = vadd.f32 %v266, %v340
  %v365 = vadd.f32 %v267, %v341
  %v366 = vadd.f32 %v268, %v342
  %v367 = vadd.f32 %v269, %v343
  %v368 = vadd.f32 %v270, %v344
  %v369 = vadd.f32 %v271, %v345
  %v370 = vadd.f32 %v272, %v346
  %v371 = vadd.f32 %v273, %v347
  %v372 = vadd.f32 %v274, %v348
  %v373 = vadd.f32 %v275, %v349
  %v374 = vadd.f32 %v276, %v350
  %v375 = vadd.f32 %v277, %v351
  %v376 = vadd.f32 %v278, %v352
  %vm377 = vcmask 277504
  %378 = vst.msk [vmem:[%s2] sm:$0xff] %vm377, %v353
  %379 = vst.msk [vmem:[%s2 + $0x8] sm:$0xff] %vm377, %v354
  %380 = vst.msk [vmem:[%s2 + $0x10] sm:$0xff] %vm377, %v355
  %381 = vst.msk [vmem:[%s2 + $0x18] sm:$0xff] %vm377, %v356
  %382 = vst.msk [vmem:[%s2 + $0x20] sm:$0xff] %vm377, %v357
  %383 = vst.msk [vmem:[%s2 + $0x28] sm:$0xff] %vm377, %v358
  %384 = vst.msk [vmem:[%s2 + $0x30] sm:$0xff] %vm377, %v359
  %385 = vst.msk [vmem:[%s2 + $0x38] sm:$0xff] %vm377, %v360
  %386 = vst.msk [vmem:[%s2 + $0x40] sm:$0xff] %vm377, %v361
  %387 = vst.msk [vmem:[%s2 + $0x48] sm:$0xff] %vm377, %v362
  %388 = vst.msk [vmem:[%s2 + $0x50] sm:$0xff] %vm377, %v363
  %389 = vst.msk [vmem:[%s2 + $0x58] sm:$0xff] %vm377, %v364
  %390 = vst.msk [vmem:[%s2 + $0x60] sm:$0xff] %vm377, %v365
  %391 = vst.msk [vmem:[%s2 + $0x68] sm:$0xff] %vm377, %v366
  %392 = vst.msk [vmem:[%s2 + $0x70] sm:$0xff] %vm377, %v367
  %393 = vst.msk [vmem:[%s2 + $0x78] sm:$0xff] %vm377, %v368
  %394 = vst.msk [vmem:[%s2 + $0x80] sm:$0xff] %vm377, %v369
  %395 = vst.msk [vmem:[%s2 + $0x88] sm:$0xff] %vm377, %v370
  %396 = vst.msk [vmem:[%s2 + $0x90] sm:$0xff] %vm377, %v371
  %397 = vst.msk [vmem:[%s2 + $0x98] sm:$0xff] %vm377, %v372
  %398 = vst.msk [vmem:[%s2 + $0xa0] sm:$0xff] %vm377, %v373
  %399 = vst.msk [vmem:[%s2 + $0xa8] sm:$0xff] %vm377, %v374
  %400 = vst.msk [vmem:[%s2 + $0xb0] sm:$0xff] %vm377, %v375
  %401 = vst.msk [vmem:[%s2 + $0xb8] sm:$0xff] %vm377, %v376
  // Predicated region
  $region10: #{pula_iterator_forward.3} parent=0 // pred_check
    _
  $region11: #{pula_iterator_forward.3} parent=0 // pred_check_branch
    %403 = sbr.rel (0) target = $region13
  $region12: #{pula_iterator_forward.3} parent=0 // pred_region
    _
  $region13: #{pula_iterator_forward.3} parent=0 // pred_fallthru
    _
  // Predicated region
  $region14: #{pula_iterator_forward.3} parent=0 // pred_check
    _
  $region15: #{pula_iterator_forward.3} parent=0 // pred_check_branch
    %405 = sbr.rel (0) target = $region17
  $region16: #{pula_iterator_forward.3} parent=0 // pred_region
    _
  $region17: #{pula_iterator_forward.3} parent=0 // pred_fallthru
    _

// kernel: reverse.1
$region0: #{reverse.1}
  %s0 = inlined_call_operand.vmem [shape: f32[2,3,32,15], index: 0, kind: input, shape index: {}]
  %s1 = inlined_call_operand.vmem [shape: f32[2,3,32,15], index: 1, kind: output, shape index: {}]
  $region1: #{reverse.1} parent=0
    #allocation0 [shape = 'u8[73728]{0}', space=vmem, size = 0x12000, scoped, tag = 'operand span for operand 0']
    #allocation1 [shape = 'u8[49152]{0}', space=vmem, size = 0xc000, scoped, tag = 'operand span for operand 1']
    %s2 = scalar_lea.vmem [#allocation0], 8
    // Predicated region
    $region2: #{reverse.1} parent=1 // pred_check
      _
    $region3: #{reverse.1} parent=1 // pred_check_branch
      %4 = sbr.rel (0) target = $region5
    $region4: #{reverse.1} parent=1 // pred_region
      // Predicated region
      $region6: #{reverse.1} parent=4 // pred_check
        _
      $region7: #{reverse.1} parent=4 // pred_check_branch
        %6 = sbr.rel (0) target = $region9
      $region8: #{reverse.1} parent=4 // pred_region
        // Predicated region
        $region21: #{reverse.1} parent=8 // pred_check
          _
        $region22: #{reverse.1} parent=8 // pred_check_branch
          %44 = sbr.rel (0) target = $region24
        $region23: #{reverse.1} parent=8 // pred_region
          loop: start=0, step=1, limit=1
          $region25: #{reverse.1} parent=23 // loop_pre_header
            _
          $region26: #{reverse.1} parent=23 // loop_header
            %s46 = sphi 0, %s50
            %p47 = scmp.ge.s32.totalorder %s46, 1
            %s51 = sphi %s0, %s0
            %s52 = sphi %s2, %s2
          $region27: #{reverse.1} parent=23 // loop_header_branch
            %49 = sbr.rel (%p47) target = $region31
          $region28: #{reverse.1} parent=23 // loop_body
            %v53 = vld [vmem:[%s51] sm:$0xff]
            %54 = vst [vmem:[%s52] sm:$0xff] %v53
            %v55 = vld [vmem:[%s51 + $0x8] sm:$0xff]
            %56 = vst [vmem:[%s52 + $0x8] sm:$0xff] %v55
            %v57 = vld [vmem:[%s51 + $0x10] sm:$0xff]
            %58 = vst [vmem:[%s52 + $0x18] sm:$0xff] %v57
            %v59 = vld [vmem:[%s51 + $0x18] sm:$0xff]
            %60 = vst [vmem:[%s52 + $0x20] sm:$0xff] %v59
            %v61 = vld [vmem:[%s51 + $0x20] sm:$0xff]
            %62 = vst [vmem:[%s52 + $0x30] sm:$0xff] %v61
            %v63 = vld [vmem:[%s51 + $0x28] sm:$0xff]
            %64 = vst [vmem:[%s52 + $0x38] sm:$0xff] %v63
            %v65 = vld [vmem:[%s51 + $0x30] sm:$0xff]
            %66 = vst [vmem:[%s52 + $0x48] sm:$0xff] %v65
            %v67 = vld [vmem:[%s51 + $0x38] sm:$0xff]
            %68 = vst [vmem:[%s52 + $0x50] sm:$0xff] %v67
            %v69 = vld [vmem:[%s51 + $0x40] sm:$0xff]
            %70 = vst [vmem:[%s52 + $0x60] sm:$0xff] %v69
            %v71 = vld [vmem:[%s51 + $0x48] sm:$0xff]
            %72 = vst [vmem:[%s52 + $0x68] sm:$0xff] %v71
            %v73 = vld [vmem:[%s51 + $0x50] sm:$0xff]
            %74 = vst [vmem:[%s52 + $0x78] sm:$0xff] %v73
            %v75 = vld [vmem:[%s51 + $0x58] sm:$0xff]
            %76 = vst [vmem:[%s52 + $0x80] sm:$0xff] %v75
          $region29: #{reverse.1} parent=23 // loop_footer
            %s50 = sadd.s32 1, %s46
          $region30: #{reverse.1} parent=23 // loop_footer_branch
            %45 = sbr.rel target = $region26
          $region31: #{reverse.1} parent=23 // loop_exit
            _
        $region24: #{reverse.1} parent=8 // pred_fallthru
          _
        // Predicated region
        $region32: #{reverse.1} parent=8 // pred_check
          _
        $region33: #{reverse.1} parent=8 // pred_check_branch
          %78 = sbr.rel target = $region35
        $region34: #{reverse.1} parent=8 // pred_region
          _
        $region35: #{reverse.1} parent=8 // pred_fallthru
          _
      $region9: #{reverse.1} parent=4 // pred_fallthru
        _
      // Predicated region
      $region10: #{reverse.1} parent=4 // pred_check
        _
      $region11: #{reverse.1} parent=4 // pred_check_branch
        %8 = sbr.rel target = $region13
      $region12: #{reverse.1} parent=4 // pred_region
        %s10 = ssub.s32 256, 1
        loop: start=0, step=1, limit=1
        $region14: #{reverse.1} parent=12 // loop_pre_header
          _
        $region15: #{reverse.1} parent=12 // loop_header
          %s12 = sphi 0, %s16
          %p13 = scmp.ge.s32.totalorder %s12, 1
          %s17 = sphi %s0, %s0
          %s18 = sphi %s2, %s2
        $region16: #{reverse.1} parent=12 // loop_header_branch
          %15 = sbr.rel (%p13) target = $region20
        $region17: #{reverse.1} parent=12 // loop_body
          %v19 = vld [vmem:[%s17] sm:%s10]
          %20 = vst [vmem:[%s18] sm:%s10] %v19
          %v21 = vld [vmem:[%s17 + $0x8] sm:%s10]
          %22 = vst [vmem:[%s18 + $0x8] sm:%s10] %v21
          %v23 = vld [vmem:[%s17 + $0x10] sm:%s10]
          %24 = vst [vmem:[%s18 + $0x18] sm:%s10] %v23
          %v25 = vld [vmem:[%s17 + $0x18] sm:%s10]
          %26 = vst [vmem:[%s18 + $0x20] sm:%s10] %v25
          %v27 = vld [vmem:[%s17 + $0x20] sm:%s10]
          %28 = vst [vmem:[%s18 + $0x30] sm:%s10] %v27
          %v29 = vld [vmem:[%s17 + $0x28] sm:%s10]
          %30 = vst [vmem:[%s18 + $0x38] sm:%s10] %v29
          %v31 = vld [vmem:[%s17 + $0x30] sm:%s10]
          %32 = vst [vmem:[%s18 + $0x48] sm:%s10] %v31
          %v33 = vld [vmem:[%s17 + $0x38] sm:%s10]
          %34 = vst [vmem:[%s18 + $0x50] sm:%s10] %v33
          %v35 = vld [vmem:[%s17 + $0x40] sm:%s10]
          %36 = vst [vmem:[%s18 + $0x60] sm:%s10] %v35
          %v37 = vld [vmem:[%s17 + $0x48] sm:%s10]
          %38 = vst [vmem:[%s18 + $0x68] sm:%s10] %v37
          %v39 = vld [vmem:[%s17 + $0x50] sm:%s10]
          %40 = vst [vmem:[%s18 + $0x78] sm:%s10] %v39
          %v41 = vld [vmem:[%s17 + $0x58] sm:%s10]
          %42 = vst [vmem:[%s18 + $0x80] sm:%s10] %v41
        $region18: #{reverse.1} parent=12 // loop_footer
          %s16 = sadd.s32 1, %s12
        $region19: #{reverse.1} parent=12 // loop_footer_branch
          %11 = sbr.rel target = $region15
        $region20: #{reverse.1} parent=12 // loop_exit
          _
      $region13: #{reverse.1} parent=4 // pred_fallthru
        _
    $region5: #{reverse.1} parent=1 // pred_fallthru
      _
    %79 = vnop
    %s80 = scalar_lea.vmem [#allocation0], 8
    %s81 = scalar_lea.vmem %s80, 7 [#allocation0]
    %v82 = vld [vmem:[%s81] ss:$-1 sm:$0xff]
    %v83 = vrot.slane %v82, 1
    %84 = vst [vmem:[#allocation1] sm:$0xff] %v83
    %s85 = scalar_lea.vmem [#allocation0], 16
    %s86 = scalar_lea.vmem %s85, 7 [#allocation0]
    %v87 = vld [vmem:[%s86] ss:$-1 sm:$0xff]
    %v88 = vrot.slane %v87, 1
    %v89 = vlaneseq
    %v90 = vshrl.u32 %v89, 7
    %vm91 = vcmp.lt.s32.totalorder %v90, 7
    %92 = vst.msk [vmem:[#allocation1] sm:$0xff] %vm91, %v88
    %s93 = scalar_lea.vmem [#allocation1], 8
    %s94 = scalar_lea.vmem [#allocation0], 7
    %v95 = vld [vmem:[%s94] ss:$-1 sm:$0xff]
    %v96 = vrot.slane %v95, 1
    %97 = vst [vmem:[%s93] sm:$0xff] %v96
    %s98 = scalar_lea.vmem [#allocation0], 8
    %s99 = scalar_lea.vmem %s98, 7 [#allocation0]
    %v100 = vld [vmem:[%s99] ss:$-1 sm:$0xff]
    %v101 = vrot.slane %v100, 1
    %v102 = vlaneseq
    %v103 = vshrl.u32 %v102, 7
    %vm104 = vcmp.lt.s32.totalorder %v103, 7
    %105 = vst.msk [vmem:[%s93] sm:$0xff] %vm104, %v101
    %s106 = scalar_lea.vmem [#allocation1], 16
    %s107 = scalar_lea.vmem [#allocation0], 24
    %s108 = scalar_lea.vmem %s107, 8 [#allocation0]
    %s109 = scalar_lea.vmem %s108, 7 [#allocation0]
    %v110 = vld [vmem:[%s109] ss:$-1 sm:$0xff]
    %v111 = vrot.slane %v110, 1
    %112 = vst [vmem:[%s106] sm:$0xff] %v111
    %s113 = scalar_lea.vmem %s107, 16 [#allocation0]
    %s114 = scalar_lea.vmem %s113, 7 [#allocation0]
    %v115 = vld [vmem:[%s114] ss:$-1 sm:$0xff]
    %v116 = vrot.slane %v115, 1
    %v117 = vlaneseq
    %v118 = vshrl.u32 %v117, 7
    %vm119 = vcmp.lt.s32.totalorder %v118, 7
    %120 = vst.msk [vmem:[%s106] sm:$0xff] %vm119, %v116
    %s121 = scalar_lea.vmem %s106, 8 [#allocation1]
    %s122 = scalar_lea.vmem %s107, 7 [#allocation0]
    %v123 = vld [vmem:[%s122] ss:$-1 sm:$0xff]
    %v124 = vrot.slane %v123, 1
    %125 = vst [vmem:[%s121] sm:$0xff] %v124
    %s126 = scalar_lea.vmem %s107, 8 [#allocation0]
    %s127 = scalar_lea.vmem %s126, 7 [#allocation0]
    %v128 = vld [vmem:[%s127] ss:$-1 sm:$0xff]
    %v129 = vrot.slane %v128, 1
    %v130 = vlaneseq
    %v131 = vshrl.u32 %v130, 7
    %vm132 = vcmp.lt.s32.totalorder %v131, 7
    %133 = vst.msk [vmem:[%s121] sm:$0xff] %vm132, %v129
    %s134 = scalar_lea.vmem [#allocation1], 32
    %s135 = scalar_lea.vmem [#allocation0], 48
    %s136 = scalar_lea.vmem %s135, 8 [#allocation0]
    %s137 = scalar_lea.vmem %s136, 7 [#allocation0]
    %v138 = vld [vmem:[%s137] ss:$-1 sm:$0xff]
    %v139 = vrot.slane %v138, 1
    %140 = vst [vmem:[%s134] sm:$0xff] %v139
    %s141 = scalar_lea.vmem %s135, 16 [#allocation0]
    %s142 = scalar_lea.vmem %s141, 7 [#allocation0]
    %v143 = vld [vmem:[%s142] ss:$-1 sm:$0xff]
    %v144 = vrot.slane %v143, 1
    %v145 = vlaneseq
    %v146 = vshrl.u32 %v145, 7
    %vm147 = vcmp.lt.s32.totalorder %v146, 7
    %148 = vst.msk [vmem:[%s134] sm:$0xff] %vm147, %v144
    %s149 = scalar_lea.vmem %s134, 8 [#allocation1]
    %s150 = scalar_lea.vmem %s135, 7 [#allocation0]
    %v151 = vld [vmem:[%s150] ss:$-1 sm:$0xff]
    %v152 = vrot.slane %v151, 1
    %153 = vst [vmem:[%s149] sm:$0xff] %v152
    %s154 = scalar_lea.vmem %s135, 8 [#allocation0]
    %s155 = scalar_lea.vmem %s154, 7 [#allocation0]
    %v156 = vld [vmem:[%s155] ss:$-1 sm:$0xff]
    %v157 = vrot.slane %v156, 1
    %v158 = vlaneseq
    %v159 = vshrl.u32 %v158, 7
    %vm160 = vcmp.lt.s32.totalorder %v159, 7
    %161 = vst.msk [vmem:[%s149] sm:$0xff] %vm160, %v157
    %s162 = scalar_lea.vmem [#allocation1], 48
    %s163 = scalar_lea.vmem [#allocation0], 72
    %s164 = scalar_lea.vmem %s163, 8 [#allocation0]
    %s165 = scalar_lea.vmem %s164, 7 [#allocation0]
    %v166 = vld [vmem:[%s165] ss:$-1 sm:$0xff]
    %v167 = vrot.slane %v166, 1
    %168 = vst [vmem:[%s162] sm:$0xff] %v167
    %s169 = scalar_lea.vmem %s163, 16 [#allocation0]
    %s170 = scalar_lea.vmem %s169, 7 [#allocation0]
    %v171 = vld [vmem:[%s170] ss:$-1 sm:$0xff]
    %v172 = vrot.slane %v171, 1
    %v173 = vlaneseq
    %v174 = vshrl.u32 %v173, 7
    %vm175 = vcmp.lt.s32.totalorder %v174, 7
    %176 = vst.msk [vmem:[%s162] sm:$0xff] %vm175, %v172
    %s177 = scalar_lea.vmem %s162, 8 [#allocation1]
    %s178 = scalar_lea.vmem %s163, 7 [#allocation0]
    %v179 = vld [vmem:[%s178] ss:$-1 sm:$0xff]
    %v180 = vrot.slane %v179, 1
    %181 = vst [vmem:[%s177] sm:$0xff] %v180
    %s182 = scalar_lea.vmem %s163, 8 [#allocation0]
    %s183 = scalar_lea.vmem %s182, 7 [#allocation0]
    %v184 = vld [vmem:[%s183] ss:$-1 sm:$0xff]
    %v185 = vrot.slane %v184, 1
    %v186 = vlaneseq
    %v187 = vshrl.u32 %v186, 7
    %vm188 = vcmp.lt.s32.totalorder %v187, 7
    %189 = vst.msk [vmem:[%s177] sm:$0xff] %vm188, %v185
    %s190 = scalar_lea.vmem [#allocation1], 64
    %s191 = scalar_lea.vmem [#allocation0], 96
    %s192 = scalar_lea.vmem %s191, 8 [#allocation0]
    %s193 = scalar_lea.vmem %s192, 7 [#allocation0]
    %v194 = vld [vmem:[%s193] ss:$-1 sm:$0xff]
    %v195 = vrot.slane %v194, 1
    %196 = vst [vmem:[%s190] sm:$0xff] %v195
    %s197 = scalar_lea.vmem %s191, 16 [#allocation0]
    %s198 = scalar_lea.vmem %s197, 7 [#allocation0]
    %v199 = vld [vmem:[%s198] ss:$-1 sm:$0xff]
    %v200 = vrot.slane %v199, 1
    %v201 = vlaneseq
    %v202 = vshrl.u32 %v201, 7
    %vm203 = vcmp.lt.s32.totalorder %v202, 7
    %204 = vst.msk [vmem:[%s190] sm:$0xff] %vm203, %v200
    %s205 = scalar_lea.vmem %s190, 8 [#allocation1]
    %s206 = scalar_lea.vmem %s191, 7 [#allocation0]
    %v207 = vld [vmem:[%s206] ss:$-1 sm:$0xff]
    %v208 = vrot.slane %v207, 1
    %209 = vst [vmem:[%s205] sm:$0xff] %v208
    %s210 = scalar_lea.vmem %s191, 8 [#allocation0]
    %s211 = scalar_lea.vmem %s210, 7 [#allocation0]
    %v212 = vld [vmem:[%s211] ss:$-1 sm:$0xff]
    %v213 = vrot.slane %v212, 1
    %v214 = vlaneseq
    %v215 = vshrl.u32 %v214, 7
    %vm216 = vcmp.lt.s32.totalorder %v215, 7
    %217 = vst.msk [vmem:[%s205] sm:$0xff] %vm216, %v213
    %s218 = scalar_lea.vmem [#allocation1], 80
    %s219 = scalar_lea.vmem [#allocation0], 120
    %s220 = scalar_lea.vmem %s219, 8 [#allocation0]
    %s221 = scalar_lea.vmem %s220, 7 [#allocation0]
    %v222 = vld [vmem:[%s221] ss:$-1 sm:$0xff]
    %v223 = vrot.slane %v222, 1
    %224 = vst [vmem:[%s218] sm:$0xff] %v223
    %s225 = scalar_lea.vmem %s219, 16 [#allocation0]
    %s226 = scalar_lea.vmem %s225, 7 [#allocation0]
    %v227 = vld [vmem:[%s226] ss:$-1 sm:$0xff]
    %v228 = vrot.slane %v227, 1
    %v229 = vlaneseq
    %v230 = vshrl.u32 %v229, 7
    %vm231 = vcmp.lt.s32.totalorder %v230, 7
    %232 = vst.msk [vmem:[%s218] sm:$0xff] %vm231, %v228
    %s233 = scalar_lea.vmem %s218, 8 [#allocation1]
    %s234 = scalar_lea.vmem %s219, 7 [#allocation0]
    %v235 = vld [vmem:[%s234] ss:$-1 sm:$0xff]
    %v236 = vrot.slane %v235, 1
    %237 = vst [vmem:[%s233] sm:$0xff] %v236
    %s238 = scalar_lea.vmem %s219, 8 [#allocation0]
    %s239 = scalar_lea.vmem %s238, 7 [#allocation0]
    %v240 = vld [vmem:[%s239] ss:$-1 sm:$0xff]
    %v241 = vrot.slane %v240, 1
    %v242 = vlaneseq
    %v243 = vshrl.u32 %v242, 7
    %vm244 = vcmp.lt.s32.totalorder %v243, 7
    %245 = vst.msk [vmem:[%s233] sm:$0xff] %vm244, %v241
    // Predicated region
    $region36: #{reverse.1} parent=1 // pred_check
      _
    $region37: #{reverse.1} parent=1 // pred_check_branch
      %247 = sbr.rel (0) target = $region39
    $region38: #{reverse.1} parent=1 // pred_region
      // Predicated region
      $region40: #{reverse.1} parent=38 // pred_check
        _
      $region41: #{reverse.1} parent=38 // pred_check_branch
        %249 = sbr.rel (0) target = $region43
      $region42: #{reverse.1} parent=38 // pred_region
        // Predicated region
        $region55: #{reverse.1} parent=42 // pred_check
          _
        $region56: #{reverse.1} parent=42 // pred_check_branch
          %287 = sbr.rel (0) target = $region58
        $region57: #{reverse.1} parent=42 // pred_region
          loop: start=0, step=1, limit=1
          $region59: #{reverse.1} parent=57 // loop_pre_header
            _
          $region60: #{reverse.1} parent=57 // loop_header
            %s289 = sphi 0, %s293
            %p290 = scmp.ge.s32.totalorder %s289, 1
            %s294 = sphi [#allocation1], [#allocation1]
            %s295 = sphi %s1, %s1
          $region61: #{reverse.1} parent=57 // loop_header_branch
            %292 = sbr.rel (%p290) target = $region65
          $region62: #{reverse.1} parent=57 // loop_body
            %v296 = vld [vmem:[%s294] sm:$0xff]
            %297 = vst [vmem:[%s295] sm:$0xff] %v296
            %v298 = vld [vmem:[%s294 + $0x8] sm:$0xff]
            %299 = vst [vmem:[%s295 + $0x8] sm:$0xff] %v298
            %v300 = vld [vmem:[%s294 + $0x10] sm:$0xff]
            %301 = vst [vmem:[%s295 + $0x10] sm:$0xff] %v300
            %v302 = vld [vmem:[%s294 + $0x18] sm:$0xff]
            %303 = vst [vmem:[%s295 + $0x18] sm:$0xff] %v302
            %v304 = vld [vmem:[%s294 + $0x20] sm:$0xff]
            %305 = vst [vmem:[%s295 + $0x20] sm:$0xff] %v304
            %v306 = vld [vmem:[%s294 + $0x28] sm:$0xff]
            %307 = vst [vmem:[%s295 + $0x28] sm:$0xff] %v306
            %v308 = vld [vmem:[%s294 + $0x30] sm:$0xff]
            %309 = vst [vmem:[%s295 + $0x30] sm:$0xff] %v308
            %v310 = vld [vmem:[%s294 + $0x38] sm:$0xff]
            %311 = vst [vmem:[%s295 + $0x38] sm:$0xff] %v310
            %v312 = vld [vmem:[%s294 + $0x40] sm:$0xff]
            %313 = vst [vmem:[%s295 + $0x40] sm:$0xff] %v312
            %v314 = vld [vmem:[%s294 + $0x48] sm:$0xff]
            %315 = vst [vmem:[%s295 + $0x48] sm:$0xff] %v314
            %v316 = vld [vmem:[%s294 + $0x50] sm:$0xff]
            %317 = vst [vmem:[%s295 + $0x50] sm:$0xff] %v316
            %v318 = vld [vmem:[%s294 + $0x58] sm:$0xff]
            %319 = vst [vmem:[%s295 + $0x58] sm:$0xff] %v318
          $region63: #{reverse.1} parent=57 // loop_footer
            %s293 = sadd.s32 1, %s289
          $region64: #{reverse.1} parent=57 // loop_footer_branch
            %288 = sbr.rel target = $region60
          $region65: #{reverse.1} parent=57 // loop_exit
            _
        $region58: #{reverse.1} parent=42 // pred_fallthru
          _
        // Predicated region
        $region66: #{reverse.1} parent=42 // pred_check
          _
        $region67: #{reverse.1} parent=42 // pred_check_branch
          %321 = sbr.rel target = $region69
        $region68: #{reverse.1} parent=42 // pred_region
          _
        $region69: #{reverse.1} parent=42 // pred_fallthru
          _
      $region43: #{reverse.1} parent=38 // pred_fallthru
        _
      // Predicated region
      $region44: #{reverse.1} parent=38 // pred_check
        _
      $region45: #{reverse.1} parent=38 // pred_check_branch
        %251 = sbr.rel target = $region47
      $region46: #{reverse.1} parent=38 // pred_region
        %s253 = ssub.s32 256, 1
        loop: start=0, step=1, limit=1
        $region48: #{reverse.1} parent=46 // loop_pre_header
          _
        $region49: #{reverse.1} parent=46 // loop_header
          %s255 = sphi 0, %s259
          %p256 = scmp.ge.s32.totalorder %s255, 1
          %s260 = sphi [#allocation1], [#allocation1]
          %s261 = sphi %s1, %s1
        $region50: #{reverse.1} parent=46 // loop_header_branch
          %258 = sbr.rel (%p256) target = $region54
        $region51: #{reverse.1} parent=46 // loop_body
          %v262 = vld [vmem:[%s260] sm:%s253]
          %263 = vst [vmem:[%s261] sm:%s253] %v262
          %v264 = vld [vmem:[%s260 + $0x8] sm:%s253]
          %265 = vst [vmem:[%s261 + $0x8] sm:%s253] %v264
          %v266 = vld [vmem:[%s260 + $0x10] sm:%s253]
          %267 = vst [vmem:[%s261 + $0x10] sm:%s253] %v266
          %v268 = vld [vmem:[%s260 + $0x18] sm:%s253]
          %269 = vst [vmem:[%s261 + $0x18] sm:%s253] %v268
          %v270 = vld [vmem:[%s260 + $0x20] sm:%s253]
          %271 = vst [vmem:[%s261 + $0x20] sm:%s253] %v270
          %v272 = vld [vmem:[%s260 + $0x28] sm:%s253]
          %273 = vst [vmem:[%s261 + $0x28] sm:%s253] %v272
          %v274 = vld [vmem:[%s260 + $0x30] sm:%s253]
          %275 = vst [vmem:[%s261 + $0x30] sm:%s253] %v274
          %v276 = vld [vmem:[%s260 + $0x38] sm:%s253]
          %277 = vst [vmem:[%s261 + $0x38] sm:%s253] %v276
          %v278 = vld [vmem:[%s260 + $0x40] sm:%s253]
          %279 = vst [vmem:[%s261 + $0x40] sm:%s253] %v278
          %v280 = vld [vmem:[%s260 + $0x48] sm:%s253]
          %281 = vst [vmem:[%s261 + $0x48] sm:%s253] %v280
          %v282 = vld [vmem:[%s260 + $0x50] sm:%s253]
          %283 = vst [vmem:[%s261 + $0x50] sm:%s253] %v282
          %v284 = vld [vmem:[%s260 + $0x58] sm:%s253]
          %285 = vst [vmem:[%s261 + $0x58] sm:%s253] %v284
        $region52: #{reverse.1} parent=46 // loop_footer
          %s259 = sadd.s32 1, %s255
        $region53: #{reverse.1} parent=46 // loop_footer_branch
          %254 = sbr.rel target = $region49
        $region54: #{reverse.1} parent=46 // loop_exit
          _
      $region47: #{reverse.1} parent=38 // pred_fallthru
        _
    $region39: #{reverse.1} parent=1 // pred_fallthru
      _
    %322 = vnop

</llo_original>
